<compile_context>
chip_gen: v7x
topology: tpu7x:2x2x1
jax: 0.10.0
libtpu: 0.0.40
codegen_flags: <defaults>
</compile_context>

<pallas_src>
import jax
import jax.numpy as jnp
from jax import lax
from jax.experimental import pallas as pl
from jax.experimental.pallas import tpu as pltpu


_VMEM_LIMIT_BYTES = 64 * 1024 * 1024    # safe on v7x (64 MiB physical); v5e/v6e can go higher
_VMEM_BUDGET_BYTES = 44 * 1024 * 1024   # working-set budget used to pick the row-strip height


# ----------------------------------------------------------------------------
# Pass 1: sub-pixel ConvTranspose2d(4,2,1) + streamed per-channel (sum, sumsq)
# ----------------------------------------------------------------------------
def _convT_stats_kernel(xp_ref, w_ref, y_ref, stats_ref):
    # xp_ref   : (1, Hp, Wp, Cin)      bf16  whole padded sample (resident across strips)
    # w_ref    : (4, 4, Cin, Cout)     bf16  per-(phase, tap) weights
    # y_ref    : (1, 4, TH, W, Cout)   bf16  raw conv output, phase-major row strip
    # stats_ref: (1, 1, 2, Cout)       f32   per-strip partial (sum, sumsq)
    TH, W, C_out = y_ref.shape[2], y_ref.shape[3], y_ref.shape[4]
    Wp, C_in = xp_ref.shape[2], xp_ref.shape[3]

    t = pl.program_id(1)
    row0 = pl.multiple_of(t * TH, TH)          # first padded-input row of this strip

    s = jnp.zeros((1, C_out), jnp.float32)     # per-channel running sum
    ss = jnp.zeros((1, C_out), jnp.float32)    # per-channel running sum of squares

    for p in range(4):                          # static unroll over the 4 output phases
        ph, pw = p // 2, p % 2
        acc = jnp.zeros((TH, W, C_out), jnp.float32)
        for dy in range(2):
            # Full-width, sublane-aligned row slab: no im2col patch is built.
            slab = xp_ref[0, pl.ds(row0 + ph + dy, TH), :, :]      # (TH, Wp, Cin)
            flat = slab.reshape(TH * Wp, C_in)                     # Wp % 8 == 0 -> cheap
            for dx in range(2):
                m = jnp.dot(flat, w_ref[p, 2 * dy + dx],
                            preferred_element_type=jnp.float32)    # MXU, f32 accumulate
                m = m.reshape(TH, Wp, C_out)
                # Column shift for this tap, done post-matmul on the Cout-wide
                # product (far less misaligned traffic than shifting Cin-wide x).
                acc = acc + m[:, pw + dx: pw + dx + W, :]
        y_ref[0, p] = acc.astype(y_ref.dtype)
        a2 = acc.reshape(TH * W, C_out)
        s = s + jnp.sum(a2, axis=0, keepdims=True)
        ss = ss + jnp.sum(a2 * a2, axis=0, keepdims=True)

    stats_ref[0, 0] = jnp.concatenate([s, ss], axis=0)             # (2, Cout)


# ----------------------------------------------------------------------------
# Pass 2: fused InstanceNorm (scale/shift) + ReLU, fully parallel over strips
# ----------------------------------------------------------------------------
def _norm_relu_kernel(y_ref, prm_ref, o_ref):
    # y_ref : (1, 4, TH, W, Cout) bf16 ; prm_ref: (1, 8, Cout) f32 ; o_ref like y_ref
    scale = prm_ref[0, 0:1, :]      # (1, Cout)  inv_std
    shift = prm_ref[0, 1:2, :]      # (1, Cout)  -mean * inv_std
    for p in range(4):
        y = y_ref[0, p].astype(jnp.float32)                        # (TH, W, Cout), f32 math
        o_ref[0, p] = jnp.maximum(y * scale + shift, 0.0).astype(o_ref.dtype)


# ----------------------------------------------------------------------------
# Row-strip selection under a VMEM budget
# ----------------------------------------------------------------------------
def _strip_bytes(th, Hp, Wp, W, C_in, C_out):
    bf, f4 = 2, 4
    resident = 2 * Hp * Wp * C_in * bf + 2 * 16 * C_in * C_out * bf     # x sample + weights (dbl-buffered)
    out_blk = 2 * 4 * th * W * C_out * bf                               # raw-output strip (dbl-buffered)
    temps = th * W * C_out * f4 + 2 * th * Wp * C_out * f4 + th * Wp * C_in * bf
    return resident + out_blk + temps


def _pick_row_tile(H, Hp, Wp, W, C_in, C_out, budget):
    for th in range(H, 0, -1):
        if H % th == 0 and _strip_bytes(th, Hp, Wp, W, C_in, C_out) <= budget:
            return th
    return 1


# ----------------------------------------------------------------------------
# Wrapper
# ----------------------------------------------------------------------------
def unet_up(x_nchw, weight, skip_nchw, eps=1e-5, row_tile=None,
            vmem_budget_bytes=_VMEM_BUDGET_BYTES):
    """UNetUp forward. x_nchw: (N,Cin,H,W), weight: (Cin,Cout,4,4) [PyTorch
    ConvTranspose2d layout], skip_nchw: (N,Cskip,2H,2W). Returns NCHW."""
    N, C_in, H, W = x_nchw.shape
    C_in_w, C_out, KH, KW = weight.shape
    assert (KH, KW) == (4, 4) and C_in_w == C_in
    Nk, C_skip, OHs, OWs = skip_nchw.shape
    OH, OW = 2 * H, 2 * W
    assert (Nk, OHs, OWs) == (N, OH, OW)
    out_dtype = x_nchw.dtype

    # NCHW -> NHWC, zero-pad spatially by 1 (width rounded to x8 for sublane
    # alignment), matmul operand in bf16.
    # TODO(synk): fold the halo zero-fill into the kernel (zeroed VMEM scratch
    # + unpadded DMA) to drop this extra HBM pass over x.
    x = jnp.transpose(x_nchw, (0, 2, 3, 1)).astype(jnp.bfloat16)
    Hp = H + 2
    Wp = ((W + 2 + 7) // 8) * 8
    xp = jnp.zeros((N, Hp, Wp, C_in), jnp.bfloat16)
    xp = xp.at[:, 1:1 + H, 1:1 + W, :].set(x)

    # Per-(phase, tap) weights: output pixel y[2r+ph, 2c+pw], tap (dy, dx) over
    # the padded input uses weight[:, :, kmap[ph][dy], kmap[pw][dx]].
    # TODO(synk): for MXU-native utilization pad C_in/C_out to 128/256 multiples
    # (production pix2pix layers already are); tiny-channel layers under-fill lanes.
    kmap = ((3, 1), (2, 0))
    w_phases = []
    for ph in range(2):
        for pw in range(2):
            taps = [weight[:, :, kmap[ph][dy], kmap[pw][dx]]
                    for dy in range(2) for dx in range(2)]          # each (Cin, Cout)
            w_phases.append(jnp.stack(taps, axis=0))                 # (4, Cin, Cout)
    wp = jnp.stack(w_phases, axis=0).astype(jnp.bfloat16)            # (4, 4, Cin, Cout)

    if row_tile is None:
        TH = _pick_row_tile(H, Hp, Wp, W, C_in, C_out, vmem_budget_bytes)
    else:
        assert 1 <= row_tile <= H and H % row_tile == 0
        TH = row_tile
    T = H // TH

    conv_cost = pl.CostEstimate(
        flops=2 * N * 4 * H * W * (4 * C_in) * C_out,
        transcendentals=0,
        bytes_accessed=int(xp.size * 2 + wp.size * 2
                           + N * 4 * H * W * C_out * 2 + N * T * 2 * C_out * 4))

    y_raw, stats = pl.pallas_call(
        _convT_stats_kernel,
        out_shape=(jax.ShapeDtypeStruct((N, 4, H, W, C_out), jnp.bfloat16),
                   jax.ShapeDtypeStruct((N, T, 2, C_out), jnp.float32)),
        grid_spec=pltpu.PrefetchScalarGridSpec(
            num_scalar_prefetch=0,
            grid=(N, T),
            in_specs=[
                pl.BlockSpec((1, Hp, Wp, C_in), lambda n, t: (n, 0, 0, 0)),
                pl.BlockSpec((4, 4, C_in, C_out), lambda n, t: (0, 0, 0, 0)),
            ],
            out_specs=[
                pl.BlockSpec((1, 4, TH, W, C_out), lambda n, t: (n, 0, t, 0, 0)),
                pl.BlockSpec((1, 1, 2, C_out), lambda n, t: (n, t, 0, 0)),
            ],
        ),
        compiler_params=pltpu.CompilerParams(
            dimension_semantics=("parallel", "parallel"),
            vmem_limit_bytes=_VMEM_LIMIT_BYTES),
        cost_estimate=conv_cost,
    )(xp, wp)

    # InstanceNorm statistics: combine per-strip partials (tiny) and fold into
    # a per-channel scale/shift for the normalize pass. f32 throughout.
    tot = jnp.sum(stats, axis=1)                          # (N, 2, Cout)
    inv_n = 1.0 / float(4 * H * W)
    mean = tot[:, 0, :] * inv_n
    var = jnp.maximum(tot[:, 1, :] * inv_n - mean * mean, 0.0)
    inv_std = lax.rsqrt(var + eps)
    prm = jnp.zeros((N, 8, C_out), jnp.float32)
    prm = prm.at[:, 0, :].set(inv_std)
    prm = prm.at[:, 1, :].set(-mean * inv_std)

    norm_cost = pl.CostEstimate(
        flops=3 * N * 4 * H * W * C_out, transcendentals=0,
        bytes_accessed=int(2 * N * 4 * H * W * C_out * 2 + prm.size * 4))

    y_act = pl.pallas_call(
        _norm_relu_kernel,
        out_shape=jax.ShapeDtypeStruct((N, 4, H, W, C_out), jnp.bfloat16),
        grid_spec=pltpu.PrefetchScalarGridSpec(
            num_scalar_prefetch=0,
            grid=(N, T),
            in_specs=[
                pl.BlockSpec((1, 4, TH, W, C_out), lambda n, t: (n, 0, t, 0, 0)),
                pl.BlockSpec((1, 8, C_out), lambda n, t: (n, 0, 0)),
            ],
            out_specs=pl.BlockSpec((1, 4, TH, W, C_out), lambda n, t: (n, 0, t, 0, 0)),
        ),
        compiler_params=pltpu.CompilerParams(
            dimension_semantics=("parallel", "parallel"),
            vmem_limit_bytes=_VMEM_LIMIT_BYTES),
        cost_estimate=norm_cost,
    )(y_raw, prm)

    # Phase interleave + NHWC->NCHW + skip concat: pure XLA glue on bf16
    # (half the traffic of the old f32 output); cast back at the very end.
    y = y_act.reshape(N, 2, 2, H, W, C_out)               # (N, ph, pw, H, W, C)
    y = jnp.transpose(y, (0, 5, 3, 1, 4, 2))              # (N, C, H, ph, W, pw)
    y = y.reshape(N, C_out, OH, OW).astype(out_dtype)
    return jnp.concatenate([y, skip_nchw.astype(out_dtype)], axis=1)


def ref_unet_up(x, weight, skip, eps=1e-5):
    """Pure-JAX f32 reference (same semantics as the PyTorch module)."""
    w_flip = jnp.transpose(weight[:, :, ::-1, ::-1], (1, 0, 2, 3))  # OIHW
    y = lax.conv_general_dilated(
        x, w_flip, window_strides=(1, 1),
        padding=[(2, 2), (2, 2)], lhs_dilation=(2, 2),
        dimension_numbers=('NCHW', 'OIHW', 'NCHW'))
    mean = jnp.mean(y, axis=(2, 3), keepdims=True)
    var = jnp.mean((y - mean) ** 2, axis=(2, 3), keepdims=True)
    y = jnp.maximum((y - mean) * lax.rsqrt(var + eps), 0.0)
    return jnp.concatenate([y, skip], axis=1)


if __name__ == "__main__":
    key = jax.random.PRNGKey(0)
    k1, k2, k3 = jax.random.split(key, 3)

    N, C_in, H, W = 2, 8, 8, 8      # in_size = 8
    C_out = 4                       # out_size = 4
    x = jax.random.normal(k1, (N, C_in, H, W), jnp.float32)
    # ConvTranspose2d weight shape: (in_channels, out_channels, kH, kW)
    weight = 0.1 * jax.random.normal(k2, (C_in, C_out, 4, 4), jnp.float32)
    skip = jax.random.normal(k3, (N, C_out, 2 * H, 2 * W), jnp.float32)

    # row_tile=4 -> 2 row strips per sample: exercises the tiled/streamed-stats path.
    out = jax.block_until_ready(unet_up(x, weight, skip, row_tile=4))
    assert out.shape == (N, 2 * C_out, 2 * H, 2 * W), out.shape

    ref = ref_unet_up(x, weight, skip)
    # Matmuls / raw output are bf16 (f32 accumulation and f32 IN stats), so
    # compare against the f32 reference at bf16-level tolerance.
    if not jnp.allclose(out, ref, atol=4e-2, rtol=4e-2):
        max_err = float(jnp.max(jnp.abs(out - ref)))
        raise AssertionError(f"mismatch vs reference, max abs err = {max_err}")

    print("KERNEL_OK")
</pallas_src>

<mosaic_0001>
module attributes {stable_mosaic.version = 11 : i64} {
  func.func @_convT_stats_kernel(%arg0: i32, %arg1: i32, %arg2: memref<1x10x16x8xbf16, #tpu.memory_space<vmem>>, %arg3: memref<4x4x8x4xbf16, #tpu.memory_space<vmem>>, %arg4: memref<1x4x4x8x4xbf16, #tpu.memory_space<vmem>>, %arg5: memref<1x1x2x4xf32, #tpu.memory_space<vmem>>) attributes {dimension_semantics = [#tpu.dimension_semantics<parallel>, #tpu.dimension_semantics<parallel>], iteration_bounds = array<i64: 2, 2>, scalar_prefetch = 0 : i64, scratch_operands = 0 : i64, tpu.core_type = #tpu.core_type<tc>, window_params = [{transform_indices = @transform_0, window_bounds = array<i64: 1, 10, 16, 8>}, {pipeline_mode = #tpu.pipeline_mode<synchronous>, transform_indices = @transform_1, window_bounds = array<i64: 4, 4, 8, 4>}, {transform_indices = @transform_2, window_bounds = array<i64: 1, 4, 4, 8, 4>}, {transform_indices = @transform_3, window_bounds = array<i64: 1, 1, 2, 4>}]} {
    %c4_i32 = arith.constant 4 : i32
    %0 = arith.muli %arg1, %c4_i32 : i32
    %1 = tpu.assume_multiple %0, 4 : i32
    %cst = arith.constant 0.000000e+00 : f32
    %2 = vector.broadcast %cst : f32 to vector<1x4xf32>
    %cst_0 = arith.constant 0.000000e+00 : f32
    %3 = vector.broadcast %cst_0 : f32 to vector<1x4xf32>
    %cst_1 = arith.constant 0.000000e+00 : f32
    %4 = vector.broadcast %cst_1 : f32 to vector<4x8x4xf32>
    %c0_i32 = arith.constant 0 : i32
    %5 = arith.addi %1, %c0_i32 : i32
    %c0_i32_2 = arith.constant 0 : i32
    %6 = arith.addi %5, %c0_i32_2 : i32
    %c0 = arith.constant 0 : index
    %7 = arith.index_cast %6 : i32 to index
    %c0_3 = arith.constant 0 : index
    %c0_4 = arith.constant 0 : index
    %8 = vector.load %arg2[%c0, %7, %c0_3, %c0_4] : memref<1x10x16x8xbf16, #tpu.memory_space<vmem>>, vector<1x4x16x8xbf16>
    %9 = vector.shape_cast %8 : vector<1x4x16x8xbf16> to vector<4x16x8xbf16>
    %10 = vector.shape_cast %9 : vector<4x16x8xbf16> to vector<64x8xbf16>
    %c0_5 = arith.constant 0 : index
    %c0_6 = arith.constant 0 : index
    %c0_7 = arith.constant 0 : index
    %c0_8 = arith.constant 0 : index
    %11 = vector.load %arg3[%c0_5, %c0_6, %c0_7, %c0_8] : memref<4x4x8x4xbf16, #tpu.memory_space<vmem>>, vector<1x1x8x4xbf16>
    %12 = vector.shape_cast %11 : vector<1x1x8x4xbf16> to vector<8x4xbf16>
    %cst_9 = arith.constant dense<0.000000e+00> : vector<64x4xf32>
    %13 = tpu.matmul %10, %12, %cst_9 {dimension_numbers = #tpu.dot_dimension_numbers<[1], [0], [0], [1], [0, 0, 1, 1], [], []>} : vector<64x8xbf16>, vector<8x4xbf16>, vector<64x4xf32> -> vector<64x4xf32>
    %14 = vector.shape_cast %13 : vector<64x4xf32> to vector<4x16x4xf32>
    %15 = vector.extract_strided_slice %14 {offsets = [0, 0, 0], sizes = [4, 8, 4], strides = [1, 1, 1]} : vector<4x16x4xf32> to vector<4x8x4xf32>
    %16 = arith.addf %4, %15 : vector<4x8x4xf32>
    %c0_10 = arith.constant 0 : index
    %c1 = arith.constant 1 : index
    %c0_11 = arith.constant 0 : index
    %c0_12 = arith.constant 0 : index
    %17 = vector.load %arg3[%c0_10, %c1, %c0_11, %c0_12] : memref<4x4x8x4xbf16, #tpu.memory_space<vmem>>, vector<1x1x8x4xbf16>
    %18 = vector.shape_cast %17 : vector<1x1x8x4xbf16> to vector<8x4xbf16>
    %cst_13 = arith.constant dense<0.000000e+00> : vector<64x4xf32>
    %19 = tpu.matmul %10, %18, %cst_13 {dimension_numbers = #tpu.dot_dimension_numbers<[1], [0], [0], [1], [0, 0, 1, 1], [], []>} : vector<64x8xbf16>, vector<8x4xbf16>, vector<64x4xf32> -> vector<64x4xf32>
    %20 = vector.shape_cast %19 : vector<64x4xf32> to vector<4x16x4xf32>
    %21 = vector.extract_strided_slice %20 {offsets = [0, 1, 0], sizes = [4, 8, 4], strides = [1, 1, 1]} : vector<4x16x4xf32> to vector<4x8x4xf32>
    %22 = arith.addf %16, %21 : vector<4x8x4xf32>
    %c0_i32_14 = arith.constant 0 : i32
    %23 = arith.addi %1, %c0_i32_14 : i32
    %c1_i32 = arith.constant 1 : i32
    %24 = arith.addi %23, %c1_i32 : i32
    %c0_15 = arith.constant 0 : index
    %25 = arith.index_cast %24 : i32 to index
    %c0_16 = arith.constant 0 : index
    %c0_17 = arith.constant 0 : index
    %26 = vector.load %arg2[%c0_15, %25, %c0_16, %c0_17] : memref<1x10x16x8xbf16, #tpu.memory_space<vmem>>, vector<1x4x16x8xbf16>
    %27 = vector.shape_cast %26 : vector<1x4x16x8xbf16> to vector<4x16x8xbf16>
    %28 = vector.shape_cast %27 : vector<4x16x8xbf16> to vector<64x8xbf16>
    %c0_18 = arith.constant 0 : index
    %c2 = arith.constant 2 : index
    %c0_19 = arith.constant 0 : index
    %c0_20 = arith.constant 0 : index
    %29 = vector.load %arg3[%c0_18, %c2, %c0_19, %c0_20] : memref<4x4x8x4xbf16, #tpu.memory_space<vmem>>, vector<1x1x8x4xbf16>
    %30 = vector.shape_cast %29 : vector<1x1x8x4xbf16> to vector<8x4xbf16>
    %cst_21 = arith.constant dense<0.000000e+00> : vector<64x4xf32>
    %31 = tpu.matmul %28, %30, %cst_21 {dimension_numbers = #tpu.dot_dimension_numbers<[1], [0], [0], [1], [0, 0, 1, 1], [], []>} : vector<64x8xbf16>, vector<8x4xbf16>, vector<64x4xf32> -> vector<64x4xf32>
    %32 = vector.shape_cast %31 : vector<64x4xf32> to vector<4x16x4xf32>
    %33 = vector.extract_strided_slice %32 {offsets = [0, 0, 0], sizes = [4, 8, 4], strides = [1, 1, 1]} : vector<4x16x4xf32> to vector<4x8x4xf32>
    %34 = arith.addf %22, %33 : vector<4x8x4xf32>
    %c0_22 = arith.constant 0 : index
    %c3 = arith.constant 3 : index
    %c0_23 = arith.constant 0 : index
    %c0_24 = arith.constant 0 : index
    %35 = vector.load %arg3[%c0_22, %c3, %c0_23, %c0_24] : memref<4x4x8x4xbf16, #tpu.memory_space<vmem>>, vector<1x1x8x4xbf16>
    %36 = vector.shape_cast %35 : vector<1x1x8x4xbf16> to vector<8x4xbf16>
    %cst_25 = arith.constant dense<0.000000e+00> : vector<64x4xf32>
    %37 = tpu.matmul %28, %36, %cst_25 {dimension_numbers = #tpu.dot_dimension_numbers<[1], [0], [0], [1], [0, 0, 1, 1], [], []>} : vector<64x8xbf16>, vector<8x4xbf16>, vector<64x4xf32> -> vector<64x4xf32>
    %38 = vector.shape_cast %37 : vector<64x4xf32> to vector<4x16x4xf32>
    %39 = vector.extract_strided_slice %38 {offsets = [0, 1, 0], sizes = [4, 8, 4], strides = [1, 1, 1]} : vector<4x16x4xf32> to vector<4x8x4xf32>
    %40 = arith.addf %34, %39 : vector<4x8x4xf32>
    %41 = arith.truncf %40 : vector<4x8x4xf32> to vector<4x8x4xbf16>
    %c0_26 = arith.constant 0 : index
    %c0_27 = arith.constant 0 : index
    %c0_28 = arith.constant 0 : index
    %c0_29 = arith.constant 0 : index
    %c0_30 = arith.constant 0 : index
    %42 = vector.load %arg4[%c0_26, %c0_27, %c0_28, %c0_29, %c0_30] : memref<1x4x4x8x4xbf16, #tpu.memory_space<vmem>>, vector<1x1x4x8x4xbf16>
    %43 = vector.shape_cast %42 : vector<1x1x4x8x4xbf16> to vector<4x8x4xbf16>
    %44 = vector.shape_cast %41 : vector<4x8x4xbf16> to vector<1x1x4x8x4xbf16>
    tpu.vector_store %arg4[%c0_26, %c0_27, %c0_28, %c0_29, %c0_30], %44 {strides = array<i32>} : memref<1x4x4x8x4xbf16, #tpu.memory_space<vmem>>, vector<1x1x4x8x4xbf16>,
    %45 = vector.shape_cast %40 : vector<4x8x4xf32> to vector<32x4xf32>
    %cst_31 = arith.constant dense<0.000000e+00> : vector<4xf32>
    %46 = vector.multi_reduction <add>, %45, %cst_31 [0] : vector<32x4xf32> to vector<4xf32>
    %47 = vector.shape_cast %46 : vector<4xf32> to vector<1x4xf32>
    %48 = arith.addf %2, %47 : vector<1x4xf32>
    %49 = arith.mulf %45, %45 : vector<32x4xf32>
    %cst_32 = arith.constant dense<0.000000e+00> : vector<4xf32>
    %50 = vector.multi_reduction <add>, %49, %cst_32 [0] : vector<32x4xf32> to vector<4xf32>
    %51 = vector.shape_cast %50 : vector<4xf32> to vector<1x4xf32>
    %52 = arith.addf %3, %51 : vector<1x4xf32>
    %cst_33 = arith.constant 0.000000e+00 : f32
    %53 = vector.broadcast %cst_33 : f32 to vector<4x8x4xf32>
    %c0_i32_34 = arith.constant 0 : i32
    %54 = arith.addi %1, %c0_i32_34 : i32
    %c0_i32_35 = arith.constant 0 : i32
    %55 = arith.addi %54, %c0_i32_35 : i32
    %c0_36 = arith.constant 0 : index
    %56 = arith.index_cast %55 : i32 to index
    %c0_37 = arith.constant 0 : index
    %c0_38 = arith.constant 0 : index
    %57 = vector.load %arg2[%c0_36, %56, %c0_37, %c0_38] : memref<1x10x16x8xbf16, #tpu.memory_space<vmem>>, vector<1x4x16x8xbf16>
    %58 = vector.shape_cast %57 : vector<1x4x16x8xbf16> to vector<4x16x8xbf16>
    %59 = vector.shape_cast %58 : vector<4x16x8xbf16> to vector<64x8xbf16>
    %c1_39 = arith.constant 1 : index
    %c0_40 = arith.constant 0 : index
    %c0_41 = arith.constant 0 : index
    %c0_42 = arith.constant 0 : index
    %60 = vector.load %arg3[%c1_39, %c0_40, %c0_41, %c0_42] : memref<4x4x8x4xbf16, #tpu.memory_space<vmem>>, vector<1x1x8x4xbf16>
    %61 = vector.shape_cast %60 : vector<1x1x8x4xbf16> to vector<8x4xbf16>
    %cst_43 = arith.constant dense<0.000000e+00> : vector<64x4xf32>
    %62 = tpu.matmul %59, %61, %cst_43 {dimension_numbers = #tpu.dot_dimension_numbers<[1], [0], [0], [1], [0, 0, 1, 1], [], []>} : vector<64x8xbf16>, vector<8x4xbf16>, vector<64x4xf32> -> vector<64x4xf32>
    %63 = vector.shape_cast %62 : vector<64x4xf32> to vector<4x16x4xf32>
    %64 = vector.extract_strided_slice %63 {offsets = [0, 1, 0], sizes = [4, 8, 4], strides = [1, 1, 1]} : vector<4x16x4xf32> to vector<4x8x4xf32>
    %65 = arith.addf %53, %64 : vector<4x8x4xf32>
    %c1_44 = arith.constant 1 : index
    %c1_45 = arith.constant 1 : index
    %c0_46 = arith.constant 0 : index
    %c0_47 = arith.constant 0 : index
    %66 = vector.load %arg3[%c1_44, %c1_45, %c0_46, %c0_47] : memref<4x4x8x4xbf16, #tpu.memory_space<vmem>>, vector<1x1x8x4xbf16>
    %67 = vector.shape_cast %66 : vector<1x1x8x4xbf16> to vector<8x4xbf16>
    %cst_48 = arith.constant dense<0.000000e+00> : vector<64x4xf32>
    %68 = tpu.matmul %59, %67, %cst_48 {dimension_numbers = #tpu.dot_dimension_numbers<[1], [0], [0], [1], [0, 0, 1, 1], [], []>} : vector<64x8xbf16>, vector<8x4xbf16>, vector<64x4xf32> -> vector<64x4xf32>
    %69 = vector.shape_cast %68 : vector<64x4xf32> to vector<4x16x4xf32>
    %70 = vector.extract_strided_slice %69 {offsets = [0, 2, 0], sizes = [4, 8, 4], strides = [1, 1, 1]} : vector<4x16x4xf32> to vector<4x8x4xf32>
    %71 = arith.addf %65, %70 : vector<4x8x4xf32>
    %c0_i32_49 = arith.constant 0 : i32
    %72 = arith.addi %1, %c0_i32_49 : i32
    %c1_i32_50 = arith.constant 1 : i32
    %73 = arith.addi %72, %c1_i32_50 : i32
    %c0_51 = arith.constant 0 : index
    %74 = arith.index_cast %73 : i32 to index
    %c0_52 = arith.constant 0 : index
    %c0_53 = arith.constant 0 : index
    %75 = vector.load %arg2[%c0_51, %74, %c0_52, %c0_53] : memref<1x10x16x8xbf16, #tpu.memory_space<vmem>>, vector<1x4x16x8xbf16>
    %76 = vector.shape_cast %75 : vector<1x4x16x8xbf16> to vector<4x16x8xbf16>
    %77 = vector.shape_cast %76 : vector<4x16x8xbf16> to vector<64x8xbf16>
    %c1_54 = arith.constant 1 : index
    %c2_55 = arith.constant 2 : index
    %c0_56 = arith.constant 0 : index
    %c0_57 = arith.constant 0 : index
    %78 = vector.load %arg3[%c1_54, %c2_55, %c0_56, %c0_57] : memref<4x4x8x4xbf16, #tpu.memory_space<vmem>>, vector<1x1x8x4xbf16>
    %79 = vector.shape_cast %78 : vector<1x1x8x4xbf16> to vector<8x4xbf16>
    %cst_58 = arith.constant dense<0.000000e+00> : vector<64x4xf32>
    %80 = tpu.matmul %77, %79, %cst_58 {dimension_numbers = #tpu.dot_dimension_numbers<[1], [0], [0], [1], [0, 0, 1, 1], [], []>} : vector<64x8xbf16>, vector<8x4xbf16>, vector<64x4xf32> -> vector<64x4xf32>
    %81 = vector.shape_cast %80 : vector<64x4xf32> to vector<4x16x4xf32>
    %82 = vector.extract_strided_slice %81 {offsets = [0, 1, 0], sizes = [4, 8, 4], strides = [1, 1, 1]} : vector<4x16x4xf32> to vector<4x8x4xf32>
    %83 = arith.addf %71, %82 : vector<4x8x4xf32>
    %c1_59 = arith.constant 1 : index
    %c3_60 = arith.constant 3 : index
    %c0_61 = arith.constant 0 : index
    %c0_62 = arith.constant 0 : index
    %84 = vector.load %arg3[%c1_59, %c3_60, %c0_61, %c0_62] : memref<4x4x8x4xbf16, #tpu.memory_space<vmem>>, vector<1x1x8x4xbf16>
    %85 = vector.shape_cast %84 : vector<1x1x8x4xbf16> to vector<8x4xbf16>
    %cst_63 = arith.constant dense<0.000000e+00> : vector<64x4xf32>
    %86 = tpu.matmul %77, %85, %cst_63 {dimension_numbers = #tpu.dot_dimension_numbers<[1], [0], [0], [1], [0, 0, 1, 1], [], []>} : vector<64x8xbf16>, vector<8x4xbf16>, vector<64x4xf32> -> vector<64x4xf32>
    %87 = vector.shape_cast %86 : vector<64x4xf32> to vector<4x16x4xf32>
    %88 = vector.extract_strided_slice %87 {offsets = [0, 2, 0], sizes = [4, 8, 4], strides = [1, 1, 1]} : vector<4x16x4xf32> to vector<4x8x4xf32>
    %89 = arith.addf %83, %88 : vector<4x8x4xf32>
    %90 = arith.truncf %89 : vector<4x8x4xf32> to vector<4x8x4xbf16>
    %c0_64 = arith.constant 0 : index
    %c1_65 = arith.constant 1 : index
    %c0_66 = arith.constant 0 : index
    %c0_67 = arith.constant 0 : index
    %c0_68 = arith.constant 0 : index
    %91 = vector.load %arg4[%c0_64, %c1_65, %c0_66, %c0_67, %c0_68] : memref<1x4x4x8x4xbf16, #tpu.memory_space<vmem>>, vector<1x1x4x8x4xbf16>
    %92 = vector.shape_cast %91 : vector<1x1x4x8x4xbf16> to vector<4x8x4xbf16>
    %93 = vector.shape_cast %90 : vector<4x8x4xbf16> to vector<1x1x4x8x4xbf16>
    tpu.vector_store %arg4[%c0_64, %c1_65, %c0_66, %c0_67, %c0_68], %93 {strides = array<i32>} : memref<1x4x4x8x4xbf16, #tpu.memory_space<vmem>>, vector<1x1x4x8x4xbf16>,
    %94 = vector.shape_cast %89 : vector<4x8x4xf32> to vector<32x4xf32>
    %cst_69 = arith.constant dense<0.000000e+00> : vector<4xf32>
    %95 = vector.multi_reduction <add>, %94, %cst_69 [0] : vector<32x4xf32> to vector<4xf32>
    %96 = vector.shape_cast %95 : vector<4xf32> to vector<1x4xf32>
    %97 = arith.addf %48, %96 : vector<1x4xf32>
    %98 = arith.mulf %94, %94 : vector<32x4xf32>
    %cst_70 = arith.constant dense<0.000000e+00> : vector<4xf32>
    %99 = vector.multi_reduction <add>, %98, %cst_70 [0] : vector<32x4xf32> to vector<4xf32>
    %100 = vector.shape_cast %99 : vector<4xf32> to vector<1x4xf32>
    %101 = arith.addf %52, %100 : vector<1x4xf32>
    %cst_71 = arith.constant 0.000000e+00 : f32
    %102 = vector.broadcast %cst_71 : f32 to vector<4x8x4xf32>
    %c1_i32_72 = arith.constant 1 : i32
    %103 = arith.addi %1, %c1_i32_72 : i32
    %c0_i32_73 = arith.constant 0 : i32
    %104 = arith.addi %103, %c0_i32_73 : i32
    %c0_74 = arith.constant 0 : index
    %105 = arith.index_cast %104 : i32 to index
    %c0_75 = arith.constant 0 : index
    %c0_76 = arith.constant 0 : index
    %106 = vector.load %arg2[%c0_74, %105, %c0_75, %c0_76] : memref<1x10x16x8xbf16, #tpu.memory_space<vmem>>, vector<1x4x16x8xbf16>
    %107 = vector.shape_cast %106 : vector<1x4x16x8xbf16> to vector<4x16x8xbf16>
    %108 = vector.shape_cast %107 : vector<4x16x8xbf16> to vector<64x8xbf16>
    %c2_77 = arith.constant 2 : index
    %c0_78 = arith.constant 0 : index
    %c0_79 = arith.constant 0 : index
    %c0_80 = arith.constant 0 : index
    %109 = vector.load %arg3[%c2_77, %c0_78, %c0_79, %c0_80] : memref<4x4x8x4xbf16, #tpu.memory_space<vmem>>, vector<1x1x8x4xbf16>
    %110 = vector.shape_cast %109 : vector<1x1x8x4xbf16> to vector<8x4xbf16>
    %cst_81 = arith.constant dense<0.000000e+00> : vector<64x4xf32>
    %111 = tpu.matmul %108, %110, %cst_81 {dimension_numbers = #tpu.dot_dimension_numbers<[1], [0], [0], [1], [0, 0, 1, 1], [], []>} : vector<64x8xbf16>, vector<8x4xbf16>, vector<64x4xf32> -> vector<64x4xf32>
    %112 = vector.shape_cast %111 : vector<64x4xf32> to vector<4x16x4xf32>
    %113 = vector.extract_strided_slice %112 {offsets = [0, 0, 0], sizes = [4, 8, 4], strides = [1, 1, 1]} : vector<4x16x4xf32> to vector<4x8x4xf32>
    %114 = arith.addf %102, %113 : vector<4x8x4xf32>
    %c2_82 = arith.constant 2 : index
    %c1_83 = arith.constant 1 : index
    %c0_84 = arith.constant 0 : index
    %c0_85 = arith.constant 0 : index
    %115 = vector.load %arg3[%c2_82, %c1_83, %c0_84, %c0_85] : memref<4x4x8x4xbf16, #tpu.memory_space<vmem>>, vector<1x1x8x4xbf16>
    %116 = vector.shape_cast %115 : vector<1x1x8x4xbf16> to vector<8x4xbf16>
    %cst_86 = arith.constant dense<0.000000e+00> : vector<64x4xf32>
    %117 = tpu.matmul %108, %116, %cst_86 {dimension_numbers = #tpu.dot_dimension_numbers<[1], [0], [0], [1], [0, 0, 1, 1], [], []>} : vector<64x8xbf16>, vector<8x4xbf16>, vector<64x4xf32> -> vector<64x4xf32>
    %118 = vector.shape_cast %117 : vector<64x4xf32> to vector<4x16x4xf32>
    %119 = vector.extract_strided_slice %118 {offsets = [0, 1, 0], sizes = [4, 8, 4], strides = [1, 1, 1]} : vector<4x16x4xf32> to vector<4x8x4xf32>
    %120 = arith.addf %114, %119 : vector<4x8x4xf32>
    %c1_i32_87 = arith.constant 1 : i32
    %121 = arith.addi %1, %c1_i32_87 : i32
    %c1_i32_88 = arith.constant 1 : i32
    %122 = arith.addi %121, %c1_i32_88 : i32
    %c0_89 = arith.constant 0 : index
    %123 = arith.index_cast %122 : i32 to index
    %c0_90 = arith.constant 0 : index
    %c0_91 = arith.constant 0 : index
    %124 = vector.load %arg2[%c0_89, %123, %c0_90, %c0_91] : memref<1x10x16x8xbf16, #tpu.memory_space<vmem>>, vector<1x4x16x8xbf16>
    %125 = vector.shape_cast %124 : vector<1x4x16x8xbf16> to vector<4x16x8xbf16>
    %126 = vector.shape_cast %125 : vector<4x16x8xbf16> to vector<64x8xbf16>
    %c2_92 = arith.constant 2 : index
    %c2_93 = arith.constant 2 : index
    %c0_94 = arith.constant 0 : index
    %c0_95 = arith.constant 0 : index
    %127 = vector.load %arg3[%c2_92, %c2_93, %c0_94, %c0_95] : memref<4x4x8x4xbf16, #tpu.memory_space<vmem>>, vector<1x1x8x4xbf16>
    %128 = vector.shape_cast %127 : vector<1x1x8x4xbf16> to vector<8x4xbf16>
    %cst_96 = arith.constant dense<0.000000e+00> : vector<64x4xf32>
    %129 = tpu.matmul %126, %128, %cst_96 {dimension_numbers = #tpu.dot_dimension_numbers<[1], [0], [0], [1], [0, 0, 1, 1], [], []>} : vector<64x8xbf16>, vector<8x4xbf16>, vector<64x4xf32> -> vector<64x4xf32>
    %130 = vector.shape_cast %129 : vector<64x4xf32> to vector<4x16x4xf32>
    %131 = vector.extract_strided_slice %130 {offsets = [0, 0, 0], sizes = [4, 8, 4], strides = [1, 1, 1]} : vector<4x16x4xf32> to vector<4x8x4xf32>
    %132 = arith.addf %120, %131 : vector<4x8x4xf32>
    %c2_97 = arith.constant 2 : index
    %c3_98 = arith.constant 3 : index
    %c0_99 = arith.constant 0 : index
    %c0_100 = arith.constant 0 : index
    %133 = vector.load %arg3[%c2_97, %c3_98, %c0_99, %c0_100] : memref<4x4x8x4xbf16, #tpu.memory_space<vmem>>, vector<1x1x8x4xbf16>
    %134 = vector.shape_cast %133 : vector<1x1x8x4xbf16> to vector<8x4xbf16>
    %cst_101 = arith.constant dense<0.000000e+00> : vector<64x4xf32>
    %135 = tpu.matmul %126, %134, %cst_101 {dimension_numbers = #tpu.dot_dimension_numbers<[1], [0], [0], [1], [0, 0, 1, 1], [], []>} : vector<64x8xbf16>, vector<8x4xbf16>, vector<64x4xf32> -> vector<64x4xf32>
    %136 = vector.shape_cast %135 : vector<64x4xf32> to vector<4x16x4xf32>
    %137 = vector.extract_strided_slice %136 {offsets = [0, 1, 0], sizes = [4, 8, 4], strides = [1, 1, 1]} : vector<4x16x4xf32> to vector<4x8x4xf32>
    %138 = arith.addf %132, %137 : vector<4x8x4xf32>
    %139 = arith.truncf %138 : vector<4x8x4xf32> to vector<4x8x4xbf16>
    %c0_102 = arith.constant 0 : index
    %c2_103 = arith.constant 2 : index
    %c0_104 = arith.constant 0 : index
    %c0_105 = arith.constant 0 : index
    %c0_106 = arith.constant 0 : index
    %140 = vector.load %arg4[%c0_102, %c2_103, %c0_104, %c0_105, %c0_106] : memref<1x4x4x8x4xbf16, #tpu.memory_space<vmem>>, vector<1x1x4x8x4xbf16>
    %141 = vector.shape_cast %140 : vector<1x1x4x8x4xbf16> to vector<4x8x4xbf16>
    %142 = vector.shape_cast %139 : vector<4x8x4xbf16> to vector<1x1x4x8x4xbf16>
    tpu.vector_store %arg4[%c0_102, %c2_103, %c0_104, %c0_105, %c0_106], %142 {strides = array<i32>} : memref<1x4x4x8x4xbf16, #tpu.memory_space<vmem>>, vector<1x1x4x8x4xbf16>,
    %143 = vector.shape_cast %138 : vector<4x8x4xf32> to vector<32x4xf32>
    %cst_107 = arith.constant dense<0.000000e+00> : vector<4xf32>
    %144 = vector.multi_reduction <add>, %143, %cst_107 [0] : vector<32x4xf32> to vector<4xf32>
    %145 = vector.shape_cast %144 : vector<4xf32> to vector<1x4xf32>
    %146 = arith.addf %97, %145 : vector<1x4xf32>
    %147 = arith.mulf %143, %143 : vector<32x4xf32>
    %cst_108 = arith.constant dense<0.000000e+00> : vector<4xf32>
    %148 = vector.multi_reduction <add>, %147, %cst_108 [0] : vector<32x4xf32> to vector<4xf32>
    %149 = vector.shape_cast %148 : vector<4xf32> to vector<1x4xf32>
    %150 = arith.addf %101, %149 : vector<1x4xf32>
    %cst_109 = arith.constant 0.000000e+00 : f32
    %151 = vector.broadcast %cst_109 : f32 to vector<4x8x4xf32>
    %c1_i32_110 = arith.constant 1 : i32
    %152 = arith.addi %1, %c1_i32_110 : i32
    %c0_i32_111 = arith.constant 0 : i32
    %153 = arith.addi %152, %c0_i32_111 : i32
    %c0_112 = arith.constant 0 : index
    %154 = arith.index_cast %153 : i32 to index
    %c0_113 = arith.constant 0 : index
    %c0_114 = arith.constant 0 : index
    %155 = vector.load %arg2[%c0_112, %154, %c0_113, %c0_114] : memref<1x10x16x8xbf16, #tpu.memory_space<vmem>>, vector<1x4x16x8xbf16>
    %156 = vector.shape_cast %155 : vector<1x4x16x8xbf16> to vector<4x16x8xbf16>
    %157 = vector.shape_cast %156 : vector<4x16x8xbf16> to vector<64x8xbf16>
    %c3_115 = arith.constant 3 : index
    %c0_116 = arith.constant 0 : index
    %c0_117 = arith.constant 0 : index
    %c0_118 = arith.constant 0 : index
    %158 = vector.load %arg3[%c3_115, %c0_116, %c0_117, %c0_118] : memref<4x4x8x4xbf16, #tpu.memory_space<vmem>>, vector<1x1x8x4xbf16>
    %159 = vector.shape_cast %158 : vector<1x1x8x4xbf16> to vector<8x4xbf16>
    %cst_119 = arith.constant dense<0.000000e+00> : vector<64x4xf32>
    %160 = tpu.matmul %157, %159, %cst_119 {dimension_numbers = #tpu.dot_dimension_numbers<[1], [0], [0], [1], [0, 0, 1, 1], [], []>} : vector<64x8xbf16>, vector<8x4xbf16>, vector<64x4xf32> -> vector<64x4xf32>
    %161 = vector.shape_cast %160 : vector<64x4xf32> to vector<4x16x4xf32>
    %162 = vector.extract_strided_slice %161 {offsets = [0, 1, 0], sizes = [4, 8, 4], strides = [1, 1, 1]} : vector<4x16x4xf32> to vector<4x8x4xf32>
    %163 = arith.addf %151, %162 : vector<4x8x4xf32>
    %c3_120 = arith.constant 3 : index
    %c1_121 = arith.constant 1 : index
    %c0_122 = arith.constant 0 : index
    %c0_123 = arith.constant 0 : index
    %164 = vector.load %arg3[%c3_120, %c1_121, %c0_122, %c0_123] : memref<4x4x8x4xbf16, #tpu.memory_space<vmem>>, vector<1x1x8x4xbf16>
    %165 = vector.shape_cast %164 : vector<1x1x8x4xbf16> to vector<8x4xbf16>
    %cst_124 = arith.constant dense<0.000000e+00> : vector<64x4xf32>
    %166 = tpu.matmul %157, %165, %cst_124 {dimension_numbers = #tpu.dot_dimension_numbers<[1], [0], [0], [1], [0, 0, 1, 1], [], []>} : vector<64x8xbf16>, vector<8x4xbf16>, vector<64x4xf32> -> vector<64x4xf32>
    %167 = vector.shape_cast %166 : vector<64x4xf32> to vector<4x16x4xf32>
    %168 = vector.extract_strided_slice %167 {offsets = [0, 2, 0], sizes = [4, 8, 4], strides = [1, 1, 1]} : vector<4x16x4xf32> to vector<4x8x4xf32>
    %169 = arith.addf %163, %168 : vector<4x8x4xf32>
    %c1_i32_125 = arith.constant 1 : i32
    %170 = arith.addi %1, %c1_i32_125 : i32
    %c1_i32_126 = arith.constant 1 : i32
    %171 = arith.addi %170, %c1_i32_126 : i32
    %c0_127 = arith.constant 0 : index
    %172 = arith.index_cast %171 : i32 to index
    %c0_128 = arith.constant 0 : index
    %c0_129 = arith.constant 0 : index
    %173 = vector.load %arg2[%c0_127, %172, %c0_128, %c0_129] : memref<1x10x16x8xbf16, #tpu.memory_space<vmem>>, vector<1x4x16x8xbf16>
    %174 = vector.shape_cast %173 : vector<1x4x16x8xbf16> to vector<4x16x8xbf16>
    %175 = vector.shape_cast %174 : vector<4x16x8xbf16> to vector<64x8xbf16>
    %c3_130 = arith.constant 3 : index
    %c2_131 = arith.constant 2 : index
    %c0_132 = arith.constant 0 : index
    %c0_133 = arith.constant 0 : index
    %176 = vector.load %arg3[%c3_130, %c2_131, %c0_132, %c0_133] : memref<4x4x8x4xbf16, #tpu.memory_space<vmem>>, vector<1x1x8x4xbf16>
    %177 = vector.shape_cast %176 : vector<1x1x8x4xbf16> to vector<8x4xbf16>
    %cst_134 = arith.constant dense<0.000000e+00> : vector<64x4xf32>
    %178 = tpu.matmul %175, %177, %cst_134 {dimension_numbers = #tpu.dot_dimension_numbers<[1], [0], [0], [1], [0, 0, 1, 1], [], []>} : vector<64x8xbf16>, vector<8x4xbf16>, vector<64x4xf32> -> vector<64x4xf32>
    %179 = vector.shape_cast %178 : vector<64x4xf32> to vector<4x16x4xf32>
    %180 = vector.extract_strided_slice %179 {offsets = [0, 1, 0], sizes = [4, 8, 4], strides = [1, 1, 1]} : vector<4x16x4xf32> to vector<4x8x4xf32>
    %181 = arith.addf %169, %180 : vector<4x8x4xf32>
    %c3_135 = arith.constant 3 : index
    %c3_136 = arith.constant 3 : index
    %c0_137 = arith.constant 0 : index
    %c0_138 = arith.constant 0 : index
    %182 = vector.load %arg3[%c3_135, %c3_136, %c0_137, %c0_138] : memref<4x4x8x4xbf16, #tpu.memory_space<vmem>>, vector<1x1x8x4xbf16>
    %183 = vector.shape_cast %182 : vector<1x1x8x4xbf16> to vector<8x4xbf16>
    %cst_139 = arith.constant dense<0.000000e+00> : vector<64x4xf32>
    %184 = tpu.matmul %175, %183, %cst_139 {dimension_numbers = #tpu.dot_dimension_numbers<[1], [0], [0], [1], [0, 0, 1, 1], [], []>} : vector<64x8xbf16>, vector<8x4xbf16>, vector<64x4xf32> -> vector<64x4xf32>
    %185 = vector.shape_cast %184 : vector<64x4xf32> to vector<4x16x4xf32>
    %186 = vector.extract_strided_slice %185 {offsets = [0, 2, 0], sizes = [4, 8, 4], strides = [1, 1, 1]} : vector<4x16x4xf32> to vector<4x8x4xf32>
    %187 = arith.addf %181, %186 : vector<4x8x4xf32>
    %188 = arith.truncf %187 : vector<4x8x4xf32> to vector<4x8x4xbf16>
    %c0_140 = arith.constant 0 : index
    %c3_141 = arith.constant 3 : index
    %c0_142 = arith.constant 0 : index
    %c0_143 = arith.constant 0 : index
    %c0_144 = arith.constant 0 : index
    %189 = vector.load %arg4[%c0_140, %c3_141, %c0_142, %c0_143, %c0_144] : memref<1x4x4x8x4xbf16, #tpu.memory_space<vmem>>, vector<1x1x4x8x4xbf16>
    %190 = vector.shape_cast %189 : vector<1x1x4x8x4xbf16> to vector<4x8x4xbf16>
    %191 = vector.shape_cast %188 : vector<4x8x4xbf16> to vector<1x1x4x8x4xbf16>
    tpu.vector_store %arg4[%c0_140, %c3_141, %c0_142, %c0_143, %c0_144], %191 {strides = array<i32>} : memref<1x4x4x8x4xbf16, #tpu.memory_space<vmem>>, vector<1x1x4x8x4xbf16>,
    %192 = vector.shape_cast %187 : vector<4x8x4xf32> to vector<32x4xf32>
    %cst_145 = arith.constant dense<0.000000e+00> : vector<4xf32>
    %193 = vector.multi_reduction <add>, %192, %cst_145 [0] : vector<32x4xf32> to vector<4xf32>
    %194 = vector.shape_cast %193 : vector<4xf32> to vector<1x4xf32>
    %195 = arith.addf %146, %194 : vector<1x4xf32>
    %196 = arith.mulf %192, %192 : vector<32x4xf32>
    %cst_146 = arith.constant dense<0.000000e+00> : vector<4xf32>
    %197 = vector.multi_reduction <add>, %196, %cst_146 [0] : vector<32x4xf32> to vector<4xf32>
    %198 = vector.shape_cast %197 : vector<4xf32> to vector<1x4xf32>
    %199 = arith.addf %150, %198 : vector<1x4xf32>
    %200 = tpu.concatenate %195, %199 in 0 : vector<1x4xf32>, vector<1x4xf32> -> vector<2x4xf32>
    %c0_147 = arith.constant 0 : index
    %c0_148 = arith.constant 0 : index
    %c0_149 = arith.constant 0 : index
    %c0_150 = arith.constant 0 : index
    %201 = vector.load %arg5[%c0_147, %c0_148, %c0_149, %c0_150] : memref<1x1x2x4xf32, #tpu.memory_space<vmem>>, vector<1x1x2x4xf32>
    %202 = vector.shape_cast %201 : vector<1x1x2x4xf32> to vector<2x4xf32>
    %203 = vector.shape_cast %200 : vector<2x4xf32> to vector<1x1x2x4xf32>
    tpu.vector_store %arg5[%c0_147, %c0_148, %c0_149, %c0_150], %203 {strides = array<i32>} : memref<1x1x2x4xf32, #tpu.memory_space<vmem>>, vector<1x1x2x4xf32>,
    return
  }
  func.func @transform_0(%arg0: i32, %arg1: i32) -> (i32, i32, i32, i32) {
    %c0_i32 = arith.constant 0 : i32
    %c0_i32_0 = arith.constant 0 : i32
    %c0_i32_1 = arith.constant 0 : i32
    %c0_i32_2 = arith.constant 0 : i32
    return %arg0, %c0_i32, %c0_i32_0, %c0_i32_1 : i32, i32, i32, i32
  }
  func.func @transform_1(%arg0: i32, %arg1: i32) -> (i32, i32, i32, i32) {
    %c0_i32 = arith.constant 0 : i32
    %c0_i32_0 = arith.constant 0 : i32
    %c0_i32_1 = arith.constant 0 : i32
    %c0_i32_2 = arith.constant 0 : i32
    %c0_i32_3 = arith.constant 0 : i32
    return %c0_i32, %c0_i32_0, %c0_i32_1, %c0_i32_2 : i32, i32, i32, i32
  }
  func.func @transform_2(%arg0: i32, %arg1: i32) -> (i32, i32, i32, i32, i32) {
    %c0_i32 = arith.constant 0 : i32
    %c0_i32_0 = arith.constant 0 : i32
    %c0_i32_1 = arith.constant 0 : i32
    %c0_i32_2 = arith.constant 0 : i32
    return %arg0, %c0_i32, %arg1, %c0_i32_0, %c0_i32_1 : i32, i32, i32, i32, i32
  }
  func.func @transform_3(%arg0: i32, %arg1: i32) -> (i32, i32, i32, i32) {
    %c0_i32 = arith.constant 0 : i32
    %c0_i32_0 = arith.constant 0 : i32
    %c0_i32_1 = arith.constant 0 : i32
    return %arg0, %arg1, %c0_i32, %c0_i32_0 : i32, i32, i32, i32
  }
}

</mosaic_0001>

<llo_original>
// kernel: tpu_custom_call.1
$region0: #{tpu_custom_call.1}
  #allocation0 [shape = 'u32[]', space=smem, size = 0x4, offset = 0x4, fixed_abs, tag = 'smem constant byte address 0x4 - core index']
  #allocation1 [shape = 'u32[144,128]{1,0:T(1,128)}', space=vmem, size = 0x12000, scoped, tag = 'internal scratch']
  #allocation10 [shape = 's32[]', space=sflag, size = 0x4, offset = 0, fixed_abs, tag = 'sflag constant byte address 0x0 - dummy sync flag']
  %s0 = inlined_call_operand.hbm [shape: bf16[2,10,16,8], index: 0, kind: input, shape index: {}]
  %s1 = inlined_call_operand.hbm [shape: bf16[4,4,8,4], index: 1, kind: input, shape index: {}]
  %s2 = inlined_call_operand.hbm [shape: bf16[2,4,8,8,4], index: 2, kind: output, shape index: {0}]
  %s3 = inlined_call_operand.hbm [shape: f32[2,2,2,4], index: 3, kind: output, shape index: {1}]
  %4 = xla_tuple %s2, %s3
  %s5 = sld [smem:[#allocation0]]
  $region57: #{tpu_custom_call.1} parent=0
    _
  %s7 = ssub.s32 1, %s5
  %s8 = scalar_select 0, %s7, %s5
  $region1: #{tpu_custom_call.1} parent=0
    #allocation2 [shape = 'u8[81920]{0}', space=vmem, size = 0x14000, scoped, tag = 'input window, operand 0']
    #allocation3 [shape = 's32[2]{0}', space=sflag, size = 0x8, scoped, tag = 'scoped memory for tpu_custom_call.1']
    #allocation4 [shape = 's32[2]{0}', space=sflag, size = 0x8, scoped, tag = 'scoped memory for tpu_custom_call.1']
    #allocation5 [shape = 'u8[32768]{0}', space=vmem, size = 0x8000, scoped, tag = 'input window, operand 1, single buffered']
    #allocation6 [shape = 's32[1]{0}', space=sflag, size = 0x4, scoped, tag = 'scoped memory for tpu_custom_call.1']
    #allocation7 [shape = 'u8[65536]{0}', space=vmem, size = 0x10000, scoped, tag = 'output window, operand 0']
    #allocation8 [shape = 'u8[2048]{0}', space=vmem, size = 0x800, scoped, tag = 'output window, operand 1']
    #allocation9 [shape = 's32[2]{0}', space=sflag, size = 0x8, scoped, tag = 'scoped memory for tpu_custom_call.1']
    %9 = vsyncpa [#allocation3], 0
    %s10 = scalar_lea.sflag [#allocation3], 1
    %11 = vsyncpa %s10, 0
    %12 = vsyncpa [#allocation6], 0
    %13 = vsyncpa [#allocation4], 0
    %s14 = scalar_lea.sflag [#allocation4], 1
    %15 = vsyncpa %s14, 0
    %16 = vsyncpa [#allocation9], 0
    %s17 = scalar_lea.sflag [#allocation9], 1
    %18 = vsyncpa %s17, 0
    loop: start=0, step=1, limit=6
    $region2: #{tpu_custom_call.1} parent=1 // loop_pre_header
      _
    $region3: #{tpu_custom_call.1} parent=1 // loop_header
      %s20 = sphi 0, %s24
      %p21 = scmp.ge.s32.totalorder %s20, 6
      %s27 = sphi 0, %s39
      %s28 = sphi 0, %s35
      %s29 = sphi 0, %s27
      %s30 = sphi 0, %s28
      %s31 = sphi 0, %s29
      %s32 = sphi 0, %s30
      %s42 = sphi 0, %s44
      %s45 = sphi 0, %s42
      %s46 = sphi 0, %s45
      %s62 = sphi 0, %s46
      %s66 = sphi 0, %s66
      %s68 = sphi 0, %s66
      %s69 = sphi 0, %s68
      %s83 = sphi 0, %s69
      %s91 = sphi 0, %s93
      %s94 = sphi 0, %s91
      %s95 = sphi 0, %s94
      %s111 = sphi 0, %s95
      %s119 = sphi 0, %s121
      %s122 = sphi 0, %s119
      %s123 = sphi 0, %s122
      %s139 = sphi 0, %s123
    $region4: #{tpu_custom_call.1} parent=1 // loop_header_branch
      %23 = sbr.rel (%p21) target = $region8
    $region5: #{tpu_custom_call.1} parent=1 // loop_body
      %s25 = ssub.s32 %s20, 1
      %s26 = ssub.s32 %s20, 2
      %s33 = sadd.s32 1, %s28
      %p34 = scmp.ge.s32.totalorder %s33, 2
      %s35 = scalar_select %p34, 0, %s33
      %s36 = sadd.s32 1, %s27
      %s37 = scalar_select %p34, %s36, %s27
      %p38 = scmp.ge.s32.totalorder %s37, 2
      %s39 = scalar_select %p38, 0, %s37
      %s40 = ssub.s32 %s27, %s39
      %p41 = scmp.eq.s32.totalorder %s40, 0
      %s43 = sadd.s32 %s42, 1
      %s44 = scalar_select %p41, %s42, %s43
      %p47 = pneg %p41
      %p48 = scmp.eq.s32.totalorder %s20, 3
      %p49 = por %p47, %p48
      %p50 = scmp.ne.s32.totalorder %s42, %s45
      %p51 = scmp.eq.s32.totalorder %s20, 0
      %p52 = por %p50, %p51
      %p53 = scmp.ne.s32.totalorder %s42, %s45
      %p54 = scmp.eq.s32.totalorder %s25, 3
      %p55 = por %p53, %p54
      %p56 = scmp.ne.s32.totalorder %s45, %s46
      %p57 = scmp.eq.s32.totalorder %s25, 0
      %p58 = por %p56, %p57
      %p59 = scmp.ne.s32.totalorder %s45, %s46
      %p60 = scmp.eq.s32.totalorder %s26, 3
      %p61 = por %p59, %p60
      %p63 = scmp.ne.s32.totalorder %s46, %s62
      %p64 = scmp.eq.s32.totalorder %s26, 0
      %p65 = por %p63, %p64
      %s67 = sadd.s32 %s66, 1
      %p70 = scmp.eq.s32.totalorder %s20, 3
      %p71 = scmp.ne.s32.totalorder %s66, %s68
      %p72 = scmp.eq.s32.totalorder %s20, 0
      %p73 = por %p71, %p72
      %p74 = scmp.ne.s32.totalorder %s66, %s68
      %p75 = scmp.eq.s32.totalorder %s25, 3
      %p76 = por %p74, %p75
      %p77 = scmp.ne.s32.totalorder %s68, %s69
      %p78 = scmp.eq.s32.totalorder %s25, 0
      %p79 = por %p77, %p78
      %p80 = scmp.ne.s32.totalorder %s68, %s69
      %p81 = scmp.eq.s32.totalorder %s26, 3
      %p82 = por %p80, %p81
      %p84 = scmp.ne.s32.totalorder %s69, %s83
      %p85 = scmp.eq.s32.totalorder %s26, 0
      %p86 = por %p84, %p85
      %s87 = ssub.s32 %s27, %s39
      %s88 = ssub.s32 %s28, %s35
      %s89 = sor.u32 %s87, %s88
      %p90 = scmp.eq.s32.totalorder %s89, 0
      %s92 = sadd.s32 %s91, 1
      %s93 = scalar_select %p90, %s91, %s92
      %p96 = pneg %p90
      %p97 = scmp.eq.s32.totalorder %s20, 3
      %p98 = por %p96, %p97
      %p99 = scmp.ne.s32.totalorder %s91, %s94
      %p100 = scmp.eq.s32.totalorder %s20, 0
      %p101 = por %p99, %p100
      %p102 = scmp.ne.s32.totalorder %s91, %s94
      %p103 = scmp.eq.s32.totalorder %s25, 3
      %p104 = por %p102, %p103
      %p105 = scmp.ne.s32.totalorder %s94, %s95
      %p106 = scmp.eq.s32.totalorder %s25, 0
      %p107 = por %p105, %p106
      %p108 = scmp.ne.s32.totalorder %s94, %s95
      %p109 = scmp.eq.s32.totalorder %s26, 3
      %p110 = por %p108, %p109
      %p112 = scmp.ne.s32.totalorder %s95, %s111
      %p113 = scmp.eq.s32.totalorder %s26, 0
      %p114 = por %p112, %p113
      %s115 = ssub.s32 %s27, %s39
      %s116 = ssub.s32 %s28, %s35
      %s117 = sor.u32 %s115, %s116
      %p118 = scmp.eq.s32.totalorder %s117, 0
      %s120 = sadd.s32 %s119, 1
      %s121 = scalar_select %p118, %s119, %s120
      %p124 = pneg %p118
      %p125 = scmp.eq.s32.totalorder %s20, 3
      %p126 = por %p124, %p125
      %p127 = scmp.ne.s32.totalorder %s119, %s122
      %p128 = scmp.eq.s32.totalorder %s20, 0
      %p129 = por %p127, %p128
      %p130 = scmp.ne.s32.totalorder %s119, %s122
      %p131 = scmp.eq.s32.totalorder %s25, 3
      %p132 = por %p130, %p131
      %p133 = scmp.ne.s32.totalorder %s122, %s123
      %p134 = scmp.eq.s32.totalorder %s25, 0
      %p135 = por %p133, %p134
      %p136 = scmp.ne.s32.totalorder %s122, %s123
      %p137 = scmp.eq.s32.totalorder %s26, 3
      %p138 = por %p136, %p137
      %p140 = scmp.ne.s32.totalorder %s123, %s139
      %p141 = scmp.eq.s32.totalorder %s26, 0
      %p142 = por %p140, %p141
      %p143 = scmp.le.s32.totalorder 1, %s20
      %p144 = scmp.lt.s32.totalorder %s20, 5
      %p145 = pnand %p143, %p144
      %p146 = pneg %p145
      // Predicated region
      $region9: #{tpu_custom_call.1} parent=5 // pred_check
        _
      $region10: #{tpu_custom_call.1} parent=5 // pred_check_branch
        %148 = sbr.rel (%p145) target = $region12
      $region11: #{tpu_custom_call.1} parent=5 // pred_region
        %s149 = ssub.s32 %s20, 1
        // Predicated region
        $region13: #{tpu_custom_call.1} parent=11 // pred_check
          %p150 = pneg %p79
        $region14: #{tpu_custom_call.1} parent=11 // pred_check_branch
          %152 = sbr.rel (%p150) target = $region16
        $region15: #{tpu_custom_call.1} parent=11 // pred_region
          %s154 = ssub.s32 1024, 1024
          %155 = vsyncadd [#allocation6], %s154
          %s156 = sshll.u32 [#allocation5], 4
          %s157 = int_to_ptr.vmem [resolvable:$true] %s156
          %162 = dma.hbm_to_vmem [thread:$0]  %s1, 1024, %s157, [#allocation6], 64, 64, 4
        $region16: #{tpu_custom_call.1} parent=11 // pred_fallthru
          _
      $region12: #{tpu_custom_call.1} parent=5 // pred_fallthru
        _
      %p163 = scmp.lt.s32.totalorder %s20, 4
      // Predicated region
      $region17: #{tpu_custom_call.1} parent=5 // pred_check
        %p164 = pneg %p163
      $region18: #{tpu_custom_call.1} parent=5 // pred_check_branch
        %166 = sbr.rel (%p164) target = $region20
      $region19: #{tpu_custom_call.1} parent=5 // pred_region
        // Predicated region
        $region21: #{tpu_custom_call.1} parent=19 // pred_check
          %p167 = pneg %p52
        $region22: #{tpu_custom_call.1} parent=19 // pred_check_branch
          %169 = sbr.rel (%p167) target = $region24
        $region23: #{tpu_custom_call.1} parent=19 // pred_region
          %s170 = sand.u32 %s42, 1
          %s171 = scalar_lea.sflag [#allocation3], %s170
          %s172 = sand.u32 %s42, 1
          %s173 = smul.addr %s172, 80
          %s174 = scalar_lea.vmem [#allocation2], %s173
          %s176 = ssub.s32 1280, 1280
          %177 = vsyncadd %s171, %s176
          %s178 = smul.addr %s27, 20
          %s179 = smul.addr %s178, 64
          %s180 = scalar_lea.hbm %s0, %s179
          %s181 = sshll.u32 %s174, 4
          %s182 = int_to_ptr.vmem [resolvable:$true] %s181
          %187 = dma.hbm_to_vmem [thread:$0]  %s180, 1280, %s182, %s171, 64, 64, 4
        $region24: #{tpu_custom_call.1} parent=19 // pred_fallthru
          _
      $region20: #{tpu_custom_call.1} parent=5 // pred_fallthru
        _
      %p188 = scmp.le.s32.totalorder 1, %s20
      %p189 = scmp.lt.s32.totalorder %s20, 5
      %p190 = pnand %p188, %p189
      %p191 = pneg %p190
      // Predicated region
      $region25: #{tpu_custom_call.1} parent=5 // pred_check
        _
      $region26: #{tpu_custom_call.1} parent=5 // pred_check_branch
        %193 = sbr.rel (%p190) target = $region28
      $region27: #{tpu_custom_call.1} parent=5 // pred_region
        %s194 = ssub.s32 %s20, 1
        %s195 = sand.u32 %s45, 1
        %s196 = scalar_lea.sflag [#allocation3], %s195
        %s197 = sand.u32 %s45, 1
        %s198 = smul.addr %s197, 80
        %s199 = scalar_lea.vmem [#allocation2], %s198
        // Predicated region
        $region29: #{tpu_custom_call.1} parent=27 // pred_check
          %p200 = pneg %p58
        $region30: #{tpu_custom_call.1} parent=27 // pred_check_branch
          %202 = sbr.rel (%p200) target = $region32
        $region31: #{tpu_custom_call.1} parent=27 // pred_region
          %203 = dma.done %s196, 1280
        $region32: #{tpu_custom_call.1} parent=27 // pred_fallthru
          _
        // Predicated region
        $region33: #{tpu_custom_call.1} parent=27 // pred_check
          %p204 = pneg %p79
        $region34: #{tpu_custom_call.1} parent=27 // pred_check_branch
          %206 = sbr.rel (%p204) target = $region36
        $region35: #{tpu_custom_call.1} parent=27 // pred_region
          %207 = dma.done [#allocation6], 1024
        $region36: #{tpu_custom_call.1} parent=27 // pred_fallthru
          _
        %s208 = sand.u32 %s45, 1
        %s209 = scalar_lea.sflag [#allocation3], %s208
        %s210 = sand.u32 %s45, 1
        %s211 = smul.addr %s210, 80
        %s212 = scalar_lea.vmem [#allocation2], %s211
        %p213 = pneg %p58
        %p214 = pneg %p55
        %p215 = pneg %p79
        %p216 = pneg %p76
        %p217 = pneg %p107
        %p218 = pneg %p104
        %s219 = sand.u32 %s94, 1
        %s220 = scalar_lea.sflag [#allocation4], %s219
        %s221 = sand.u32 %s94, 1
        %s222 = smul.addr %s221, 64
        %s223 = scalar_lea.vmem [#allocation7], %s222
        %p224 = pneg %p135
        %p225 = pneg %p132
        %s226 = sand.u32 %s122, 1
        %s227 = scalar_lea.sflag [#allocation9], %s226
        %s228 = sand.u32 %s122, 1
        %s229 = smul.addr %s228, 2
        %s230 = scalar_lea.vmem [#allocation8], %s229
        %s231 = smul.u32 4, %s30
        %s233 = smul.u32 %s30, 4
        %s234 = smul.u32 %s233, 2
        %s235 = smul.addr %s234, 4
        %s236 = scalar_lea.vmem %s199, %s235 [#allocation2]
        %v237 = vld [vmem:[%s236] sm:$0xf]
        %v238 = vld [vmem:[%s236 + $0x4] sm:$0xf]
        %v239 = vld [vmem:[%s236 + $0x8] sm:$0xf]
        %v240 = vld [vmem:[%s236 + $0xc] sm:$0xf]
        %v241 = vld [vmem:[%s236 + $0x10] sm:$0xf]
        %v242 = vld [vmem:[%s236 + $0x14] sm:$0xf]
        %v243 = vld [vmem:[%s236 + $0x18] sm:$0xf]
        %v244 = vld [vmem:[%s236 + $0x1c] sm:$0xf]
        %v245 = vld [vmem:[#allocation5] sm:$0xf]
        %v254 = vunpack.c.l.b16 %v237
        %v255 = vunpack.c.l.b16 %v238
        %v256 = vunpack.c.l.b16 %v239
        %v257 = vunpack.c.l.b16 %v240
        %v258 = vunpack.c.l.b16 %v241
        %v259 = vunpack.c.l.b16 %v242
        %v260 = vunpack.c.l.b16 %v243
        %v261 = vunpack.c.l.b16 %v244
        %v262 = vpack.c.b16 %v255, %v254
        %v263 = vpack.c.b16 %v257, %v256
        %v264 = vpack.c.b16 %v259, %v258
        %v265 = vpack.c.b16 %v261, %v260
        %vm266 = vcmask 64512
        %v268 = vsel %vm266, %v262, 0
        %v271 = vsel %vm266, %v263, 0
        %v274 = vsel %vm266, %v264, 0
        %v277 = vsel %vm266, %v265, 0
        %vm279 = vcmask 1043456
        %v281 = vsel %vm279, %v245, 0
        %283 = vmatprep.subr.bf16.mxu0 0
        %284 = vmatpush1.bf16.msra.mxu0 %v281
        %285 = vmatprep.subr.bf16.mxu0 0
        %286 = vmatpush1.bf16.msra.mxu0 0
        %287 = vmatprep.subr.bf16.mxu0 0
        %288 = vmatpush1.bf16.msra.mxu0 0
        %289 = vmatprep.subr.bf16.mxu0 0
        %290 = vmatpush1.bf16.msra.mxu0 0
        %291 = vmatprep.subr.bf16.mxu0 0
        %292 = vmatpush1.bf16.msra.mxu0 0
        %293 = vmatprep.subr.bf16.mxu0 0
        %294 = vmatpush1.bf16.msra.mxu0 0
        %295 = vmatprep.subr.bf16.mxu0 0
        %296 = vmatpush1.bf16.msra.mxu0 0
        %297 = vmatprep.subr.bf16.mxu0 0
        %298 = vmatpush1.bf16.msra.mxu0 0
        %299 = vmatprep.subr.bf16.mxu0 0
        %300 = vmatpush1.bf16.msra.mxu0 0
        %301 = vmatprep.subr.bf16.mxu0 0
        %302 = vmatpush1.bf16.msra.mxu0 0
        %303 = vmatprep.subr.bf16.mxu0 0
        %304 = vmatpush1.bf16.msra.mxu0 0
        %305 = vmatprep.subr.bf16.mxu0 0
        %306 = vmatpush1.bf16.msra.mxu0 0
        %307 = vmatprep.subr.bf16.mxu0 0
        %308 = vmatpush1.bf16.msra.mxu0 0
        %309 = vmatprep.subr.bf16.mxu0 0
        %310 = vmatpush1.bf16.msra.mxu0 0
        %311 = vmatprep.subr.bf16.mxu0 0
        %312 = vmatpush1.bf16.msra.mxu0 0
        %313 = vmatprep.subr.bf16.mxu0 0
        %314 = vmatpush1.bf16.msra.mxu0 0
        %315 = vmatprep.mubr.bf16.mxu0 0
        %316 = vmatmul.mubr.bf16.gmra.mrb[0].mxu0 %v268
        %v317 = vpop.f32.mrb[0].mxu0
        %v318 = vadd.f32 0.0, %v317
        %v319 = vpop.f32.mrb[0].mxu0
        %v320 = vpop.f32.mrb[0].mxu0
        %v321 = vpop.f32.mrb[0].mxu0
        %322 = vmatprep.mubr.bf16.mxu0 0
        %323 = vmatmul.mubr.bf16.gmra.mrb[0].mxu0 %v271
        %v324 = vpop.f32.mrb[0].mxu0
        %v325 = vadd.f32 0.0, %v324
        %v326 = vpop.f32.mrb[0].mxu0
        %v327 = vpop.f32.mrb[0].mxu0
        %v328 = vpop.f32.mrb[0].mxu0
        %329 = vmatprep.mubr.bf16.mxu0 0
        %330 = vmatmul.mubr.bf16.gmra.mrb[0].mxu0 %v274
        %v331 = vpop.f32.mrb[0].mxu0
        %v332 = vadd.f32 0.0, %v331
        %v333 = vpop.f32.mrb[0].mxu0
        %v334 = vpop.f32.mrb[0].mxu0
        %v335 = vpop.f32.mrb[0].mxu0
        %336 = vmatprep.mubr.bf16.mxu0 0
        %337 = vmatmul.mubr.bf16.gmra.mrb[0].mxu0 %v277
        %v338 = vpop.f32.mrb[0].mxu0
        %v339 = vadd.f32 0.0, %v338
        %v340 = vpop.f32.mrb[0].mxu0
        %v341 = vpop.f32.mrb[0].mxu0
        %v342 = vpop.f32.mrb[0].mxu0
        %343 = vdwg.mxu0
        %v344 = vadd.f32 %v318, 0.0
        %v345 = vadd.f32 %v325, 0.0
        %v346 = vadd.f32 %v332, 0.0
        %v347 = vadd.f32 %v339, 0.0
        %s348 = scalar_lea.vmem [#allocation5], 4
        %v349 = vld [vmem:[%s348] sm:$0xf]
        %v351 = vsel %vm279, %v349, 0
        %353 = vmatprep.subr.bf16.mxu0 0
        %354 = vmatpush1.bf16.msra.mxu0 %v351
        %355 = vmatprep.subr.bf16.mxu0 0
        %356 = vmatpush1.bf16.msra.mxu0 0
        %357 = vmatprep.subr.bf16.mxu0 0
        %358 = vmatpush1.bf16.msra.mxu0 0
        %359 = vmatprep.subr.bf16.mxu0 0
        %360 = vmatpush1.bf16.msra.mxu0 0
        %361 = vmatprep.subr.bf16.mxu0 0
        %362 = vmatpush1.bf16.msra.mxu0 0
        %363 = vmatprep.subr.bf16.mxu0 0
        %364 = vmatpush1.bf16.msra.mxu0 0
        %365 = vmatprep.subr.bf16.mxu0 0
        %366 = vmatpush1.bf16.msra.mxu0 0
        %367 = vmatprep.subr.bf16.mxu0 0
        %368 = vmatpush1.bf16.msra.mxu0 0
        %369 = vmatprep.subr.bf16.mxu0 0
        %370 = vmatpush1.bf16.msra.mxu0 0
        %371 = vmatprep.subr.bf16.mxu0 0
        %372 = vmatpush1.bf16.msra.mxu0 0
        %373 = vmatprep.subr.bf16.mxu0 0
        %374 = vmatpush1.bf16.msra.mxu0 0
        %375 = vmatprep.subr.bf16.mxu0 0
        %376 = vmatpush1.bf16.msra.mxu0 0
        %377 = vmatprep.subr.bf16.mxu0 0
        %378 = vmatpush1.bf16.msra.mxu0 0
        %379 = vmatprep.subr.bf16.mxu0 0
        %380 = vmatpush1.bf16.msra.mxu0 0
        %381 = vmatprep.subr.bf16.mxu0 0
        %382 = vmatpush1.bf16.msra.mxu0 0
        %383 = vmatprep.subr.bf16.mxu0 0
        %384 = vmatpush1.bf16.msra.mxu0 0
        %385 = vmatprep.mubr.bf16.mxu0 0
        %386 = vmatmul.mubr.bf16.gmra.mrb[0].mxu0 %v268
        %v387 = vpop.f32.mrb[0].mxu0
        %v388 = vadd.f32 0.0, %v387
        %v389 = vpop.f32.mrb[0].mxu0
        %v390 = vpop.f32.mrb[0].mxu0
        %v391 = vadd.f32 0.0, %v390
        %v392 = vpop.f32.mrb[0].mxu0
        %393 = vmatprep.mubr.bf16.mxu0 0
        %394 = vmatmul.mubr.bf16.gmra.mrb[0].mxu0 %v271
        %v395 = vpop.f32.mrb[0].mxu0
        %v396 = vadd.f32 0.0, %v395
        %v397 = vpop.f32.mrb[0].mxu0
        %v398 = vpop.f32.mrb[0].mxu0
        %v399 = vadd.f32 0.0, %v398
        %v400 = vpop.f32.mrb[0].mxu0
        %401 = vmatprep.mubr.bf16.mxu0 0
        %402 = vmatmul.mubr.bf16.gmra.mrb[0].mxu0 %v274
        %v403 = vpop.f32.mrb[0].mxu0
        %v404 = vadd.f32 0.0, %v403
        %v405 = vpop.f32.mrb[0].mxu0
        %v406 = vpop.f32.mrb[0].mxu0
        %v407 = vadd.f32 0.0, %v406
        %v408 = vpop.f32.mrb[0].mxu0
        %409 = vmatprep.mubr.bf16.mxu0 0
        %410 = vmatmul.mubr.bf16.gmra.mrb[0].mxu0 %v277
        %v411 = vpop.f32.mrb[0].mxu0
        %v412 = vadd.f32 0.0, %v411
        %v413 = vpop.f32.mrb[0].mxu0
        %v414 = vpop.f32.mrb[0].mxu0
        %v415 = vadd.f32 0.0, %v414
        %v416 = vpop.f32.mrb[0].mxu0
        %417 = vdwg.mxu0
        %vm426 = vcmask 1046528
        %v427 = vrot.slane %v388, 1
        %v428 = vrot.slane %v391, 1
        %v429 = vsel %vm426, %v427, %v428
        %v430 = vrot.slane %v396, 1
        %v431 = vrot.slane %v399, 1
        %v432 = vsel %vm426, %v430, %v431
        %v433 = vrot.slane %v404, 1
        %v434 = vrot.slane %v407, 1
        %v435 = vsel %vm426, %v433, %v434
        %v436 = vrot.slane %v412, 1
        %v437 = vrot.slane %v415, 1
        %v438 = vsel %vm426, %v436, %v437
        %v443 = vadd.f32 %v344, %v429
        %v444 = vadd.f32 %v345, %v432
        %v445 = vadd.f32 %v346, %v435
        %v446 = vadd.f32 %v347, %v438
        %s447 = sadd.s32 %s233, 1
        %s448 = smul.u32 %s447, 2
        %s449 = smul.addr %s448, 4
        %s450 = scalar_lea.vmem %s199, %s449 [#allocation2]
        %v451 = vld [vmem:[%s450] sm:$0xf]
        %v452 = vld [vmem:[%s450 + $0x4] sm:$0xf]
        %v453 = vld [vmem:[%s450 + $0x8] sm:$0xf]
        %v454 = vld [vmem:[%s450 + $0xc] sm:$0xf]
        %v455 = vld [vmem:[%s450 + $0x10] sm:$0xf]
        %v456 = vld [vmem:[%s450 + $0x14] sm:$0xf]
        %v457 = vld [vmem:[%s450 + $0x18] sm:$0xf]
        %v458 = vld [vmem:[%s450 + $0x1c] sm:$0xf]
        %s459 = scalar_lea.vmem [#allocation5], 8
        %v460 = vld [vmem:[%s459] sm:$0xf]
        %v469 = vunpack.c.l.b16 %v451
        %v470 = vunpack.c.l.b16 %v452
        %v471 = vunpack.c.l.b16 %v453
        %v472 = vunpack.c.l.b16 %v454
        %v473 = vunpack.c.l.b16 %v455
        %v474 = vunpack.c.l.b16 %v456
        %v475 = vunpack.c.l.b16 %v457
        %v476 = vunpack.c.l.b16 %v458
        %v477 = vpack.c.b16 %v470, %v469
        %v478 = vpack.c.b16 %v472, %v471
        %v479 = vpack.c.b16 %v474, %v473
        %v480 = vpack.c.b16 %v476, %v475
        %v482 = vsel %vm266, %v477, 0
        %v485 = vsel %vm266, %v478, 0
        %v488 = vsel %vm266, %v479, 0
        %v491 = vsel %vm266, %v480, 0
        %v494 = vsel %vm279, %v460, 0
        %496 = vmatprep.subr.bf16.mxu0 0
        %497 = vmatpush1.bf16.msra.mxu0 %v494
        %498 = vmatprep.subr.bf16.mxu0 0
        %499 = vmatpush1.bf16.msra.mxu0 0
        %500 = vmatprep.subr.bf16.mxu0 0
        %501 = vmatpush1.bf16.msra.mxu0 0
        %502 = vmatprep.subr.bf16.mxu0 0
        %503 = vmatpush1.bf16.msra.mxu0 0
        %504 = vmatprep.subr.bf16.mxu0 0
        %505 = vmatpush1.bf16.msra.mxu0 0
        %506 = vmatprep.subr.bf16.mxu0 0
        %507 = vmatpush1.bf16.msra.mxu0 0
        %508 = vmatprep.subr.bf16.mxu0 0
        %509 = vmatpush1.bf16.msra.mxu0 0
        %510 = vmatprep.subr.bf16.mxu0 0
        %511 = vmatpush1.bf16.msra.mxu0 0
        %512 = vmatprep.subr.bf16.mxu0 0
        %513 = vmatpush1.bf16.msra.mxu0 0
        %514 = vmatprep.subr.bf16.mxu0 0
        %515 = vmatpush1.bf16.msra.mxu0 0
        %516 = vmatprep.subr.bf16.mxu0 0
        %517 = vmatpush1.bf16.msra.mxu0 0
        %518 = vmatprep.subr.bf16.mxu0 0
        %519 = vmatpush1.bf16.msra.mxu0 0
        %520 = vmatprep.subr.bf16.mxu0 0
        %521 = vmatpush1.bf16.msra.mxu0 0
        %522 = vmatprep.subr.bf16.mxu0 0
        %523 = vmatpush1.bf16.msra.mxu0 0
        %524 = vmatprep.subr.bf16.mxu0 0
        %525 = vmatpush1.bf16.msra.mxu0 0
        %526 = vmatprep.subr.bf16.mxu0 0
        %527 = vmatpush1.bf16.msra.mxu0 0
        %528 = vmatprep.mubr.bf16.mxu0 0
        %529 = vmatmul.mubr.bf16.gmra.mrb[0].mxu0 %v482
        %v530 = vpop.f32.mrb[0].mxu0
        %v531 = vadd.f32 0.0, %v530
        %v532 = vpop.f32.mrb[0].mxu0
        %v533 = vpop.f32.mrb[0].mxu0
        %v534 = vpop.f32.mrb[0].mxu0
        %535 = vmatprep.mubr.bf16.mxu0 0
        %536 = vmatmul.mubr.bf16.gmra.mrb[0].mxu0 %v485
        %v537 = vpop.f32.mrb[0].mxu0
        %v538 = vadd.f32 0.0, %v537
        %v539 = vpop.f32.mrb[0].mxu0
        %v540 = vpop.f32.mrb[0].mxu0
        %v541 = vpop.f32.mrb[0].mxu0
        %542 = vmatprep.mubr.bf16.mxu0 0
        %543 = vmatmul.mubr.bf16.gmra.mrb[0].mxu0 %v488
        %v544 = vpop.f32.mrb[0].mxu0
        %v545 = vadd.f32 0.0, %v544
        %v546 = vpop.f32.mrb[0].mxu0
        %v547 = vpop.f32.mrb[0].mxu0
        %v548 = vpop.f32.mrb[0].mxu0
        %549 = vmatprep.mubr.bf16.mxu0 0
        %550 = vmatmul.mubr.bf16.gmra.mrb[0].mxu0 %v491
        %v551 = vpop.f32.mrb[0].mxu0
        %v552 = vadd.f32 0.0, %v551
        %v553 = vpop.f32.mrb[0].mxu0
        %v554 = vpop.f32.mrb[0].mxu0
        %v555 = vpop.f32.mrb[0].mxu0
        %556 = vdwg.mxu0
        %v557 = vadd.f32 %v443, %v531
        %v558 = vadd.f32 %v444, %v538
        %v559 = vadd.f32 %v445, %v545
        %v560 = vadd.f32 %v446, %v552
        %s561 = scalar_lea.vmem [#allocation5], 12
        %v562 = vld [vmem:[%s561] sm:$0xf]
        %v564 = vsel %vm279, %v562, 0
        %566 = vmatprep.subr.bf16.mxu0 0
        %567 = vmatpush1.bf16.msra.mxu0 %v564
        %568 = vmatprep.subr.bf16.mxu0 0
        %569 = vmatpush1.bf16.msra.mxu0 0
        %570 = vmatprep.subr.bf16.mxu0 0
        %571 = vmatpush1.bf16.msra.mxu0 0
        %572 = vmatprep.subr.bf16.mxu0 0
        %573 = vmatpush1.bf16.msra.mxu0 0
        %574 = vmatprep.subr.bf16.mxu0 0
        %575 = vmatpush1.bf16.msra.mxu0 0
        %576 = vmatprep.subr.bf16.mxu0 0
        %577 = vmatpush1.bf16.msra.mxu0 0
        %578 = vmatprep.subr.bf16.mxu0 0
        %579 = vmatpush1.bf16.msra.mxu0 0
        %580 = vmatprep.subr.bf16.mxu0 0
        %581 = vmatpush1.bf16.msra.mxu0 0
        %582 = vmatprep.subr.bf16.mxu0 0
        %583 = vmatpush1.bf16.msra.mxu0 0
        %584 = vmatprep.subr.bf16.mxu0 0
        %585 = vmatpush1.bf16.msra.mxu0 0
        %586 = vmatprep.subr.bf16.mxu0 0
        %587 = vmatpush1.bf16.msra.mxu0 0
        %588 = vmatprep.subr.bf16.mxu0 0
        %589 = vmatpush1.bf16.msra.mxu0 0
        %590 = vmatprep.subr.bf16.mxu0 0
        %591 = vmatpush1.bf16.msra.mxu0 0
        %592 = vmatprep.subr.bf16.mxu0 0
        %593 = vmatpush1.bf16.msra.mxu0 0
        %594 = vmatprep.subr.bf16.mxu0 0
        %595 = vmatpush1.bf16.msra.mxu0 0
        %596 = vmatprep.subr.bf16.mxu0 0
        %597 = vmatpush1.bf16.msra.mxu0 0
        %598 = vmatprep.mubr.bf16.mxu0 0
        %599 = vmatmul.mubr.bf16.gmra.mrb[0].mxu0 %v482
        %v600 = vpop.f32.mrb[0].mxu0
        %v601 = vadd.f32 0.0, %v600
        %v602 = vpop.f32.mrb[0].mxu0
        %v603 = vpop.f32.mrb[0].mxu0
        %v604 = vadd.f32 0.0, %v603
        %v605 = vpop.f32.mrb[0].mxu0
        %606 = vmatprep.mubr.bf16.mxu0 0
        %607 = vmatmul.mubr.bf16.gmra.mrb[0].mxu0 %v485
        %v608 = vpop.f32.mrb[0].mxu0
        %v609 = vadd.f32 0.0, %v608
        %v610 = vpop.f32.mrb[0].mxu0
        %v611 = vpop.f32.mrb[0].mxu0
        %v612 = vadd.f32 0.0, %v611
        %v613 = vpop.f32.mrb[0].mxu0
        %614 = vmatprep.mubr.bf16.mxu0 0
        %615 = vmatmul.mubr.bf16.gmra.mrb[0].mxu0 %v488
        %v616 = vpop.f32.mrb[0].mxu0
        %v617 = vadd.f32 0.0, %v616
        %v618 = vpop.f32.mrb[0].mxu0
        %v619 = vpop.f32.mrb[0].mxu0
        %v620 = vadd.f32 0.0, %v619
        %v621 = vpop.f32.mrb[0].mxu0
        %622 = vmatprep.mubr.bf16.mxu0 0
        %623 = vmatmul.mubr.bf16.gmra.mrb[0].mxu0 %v491
        %v624 = vpop.f32.mrb[0].mxu0
        %v625 = vadd.f32 0.0, %v624
        %v626 = vpop.f32.mrb[0].mxu0
        %v627 = vpop.f32.mrb[0].mxu0
        %v628 = vadd.f32 0.0, %v627
        %v629 = vpop.f32.mrb[0].mxu0
        %630 = vdwg.mxu0
        %v639 = vrot.slane %v601, 1
        %v640 = vrot.slane %v604, 1
        %v641 = vsel %vm426, %v639, %v640
        %v642 = vrot.slane %v609, 1
        %v643 = vrot.slane %v612, 1
        %v644 = vsel %vm426, %v642, %v643
        %v645 = vrot.slane %v617, 1
        %v646 = vrot.slane %v620, 1
        %v647 = vsel %vm426, %v645, %v646
        %v648 = vrot.slane %v625, 1
        %v649 = vrot.slane %v628, 1
        %v650 = vsel %vm426, %v648, %v649
        %v655 = vadd.f32 %v557, %v641
        %v656 = vadd.f32 %v558, %v644
        %v657 = vadd.f32 %v559, %v647
        %v658 = vadd.f32 %v560, %v650
        %v659 = vpack.c.bf16 %v655, %v655
        %v660 = vpack.c.bf16 %v656, %v656
        %v661 = vpack.c.bf16 %v657, %v657
        %v662 = vpack.c.bf16 %v658, %v658
        %vm663 = vcmask 27648
        %664 = vst.msk [vmem:[%s223] sm:$0xf] %vm663, %v659
        %665 = vst.msk [vmem:[%s223 + $0x4] sm:$0xf] %vm663, %v660
        %666 = vst.msk [vmem:[%s223 + $0x8] sm:$0xf] %vm663, %v661
        %667 = vst.msk [vmem:[%s223 + $0xc] sm:$0xf] %vm663, %v662
        %vm668 = vcmask 31744
        %v669 = vsel %vm668, %v655, 0.0
        %v670 = vsel %vm668, %v656, 0.0
        %v671 = vadd.f32 %v669, %v670
        %v672 = vsel %vm668, %v657, 0.0
        %v673 = vadd.f32 %v671, %v672
        %v674 = vsel %vm668, %v658, 0.0
        %v675 = vadd.f32 %v673, %v674
        %v676 = vrot.slane %v675, 4
        %v677 = vadd.f32 %v675, %v676
        %v678 = vrot.slane %v677, 2
        %v679 = vadd.f32 %v677, %v678
        %v680 = vrot.slane %v679, 1
        %v681 = vadd.f32 %v679, %v680
        %v682 = vadd.f32 %v681, 0.0
        %v683 = vmul.f32 %v655, %v655
        %v684 = vmul.f32 %v656, %v656
        %v685 = vmul.f32 %v657, %v657
        %v686 = vmul.f32 %v658, %v658
        %v687 = vsel %vm668, %v683, 0.0
        %v688 = vsel %vm668, %v684, 0.0
        %v689 = vadd.f32 %v687, %v688
        %v690 = vsel %vm668, %v685, 0.0
        %v691 = vadd.f32 %v689, %v690
        %v692 = vsel %vm668, %v686, 0.0
        %v693 = vadd.f32 %v691, %v692
        %v694 = vrot.slane %v693, 4
        %v695 = vadd.f32 %v693, %v694
        %v696 = vrot.slane %v695, 2
        %v697 = vadd.f32 %v695, %v696
        %v698 = vrot.slane %v697, 1
        %v699 = vadd.f32 %v697, %v698
        %v700 = vadd.f32 %v699, 0.0
        %v701 = vld [vmem:[%s236] sm:$0xf]
        %v702 = vld [vmem:[%s236 + $0x4] sm:$0xf]
        %v703 = vld [vmem:[%s236 + $0x8] sm:$0xf]
        %v704 = vld [vmem:[%s236 + $0xc] sm:$0xf]
        %v705 = vld [vmem:[%s236 + $0x10] sm:$0xf]
        %v706 = vld [vmem:[%s236 + $0x14] sm:$0xf]
        %v707 = vld [vmem:[%s236 + $0x18] sm:$0xf]
        %v708 = vld [vmem:[%s236 + $0x1c] sm:$0xf]
        %s709 = scalar_lea.vmem [#allocation5], 16
        %v710 = vld [vmem:[%s709] sm:$0xf]
        %v719 = vunpack.c.l.b16 %v701
        %v720 = vunpack.c.l.b16 %v702
        %v721 = vunpack.c.l.b16 %v703
        %v722 = vunpack.c.l.b16 %v704
        %v723 = vunpack.c.l.b16 %v705
        %v724 = vunpack.c.l.b16 %v706
        %v725 = vunpack.c.l.b16 %v707
        %v726 = vunpack.c.l.b16 %v708
        %v727 = vpack.c.b16 %v720, %v719
        %v728 = vpack.c.b16 %v722, %v721
        %v729 = vpack.c.b16 %v724, %v723
        %v730 = vpack.c.b16 %v726, %v725
        %v732 = vsel %vm266, %v727, 0
        %v735 = vsel %vm266, %v728, 0
        %v738 = vsel %vm266, %v729, 0
        %v741 = vsel %vm266, %v730, 0
        %v744 = vsel %vm279, %v710, 0
        %746 = vmatprep.subr.bf16.mxu0 0
        %747 = vmatpush1.bf16.msra.mxu0 %v744
        %748 = vmatprep.subr.bf16.mxu0 0
        %749 = vmatpush1.bf16.msra.mxu0 0
        %750 = vmatprep.subr.bf16.mxu0 0
        %751 = vmatpush1.bf16.msra.mxu0 0
        %752 = vmatprep.subr.bf16.mxu0 0
        %753 = vmatpush1.bf16.msra.mxu0 0
        %754 = vmatprep.subr.bf16.mxu0 0
        %755 = vmatpush1.bf16.msra.mxu0 0
        %756 = vmatprep.subr.bf16.mxu0 0
        %757 = vmatpush1.bf16.msra.mxu0 0
        %758 = vmatprep.subr.bf16.mxu0 0
        %759 = vmatpush1.bf16.msra.mxu0 0
        %760 = vmatprep.subr.bf16.mxu0 0
        %761 = vmatpush1.bf16.msra.mxu0 0
        %762 = vmatprep.subr.bf16.mxu0 0
        %763 = vmatpush1.bf16.msra.mxu0 0
        %764 = vmatprep.subr.bf16.mxu0 0
        %765 = vmatpush1.bf16.msra.mxu0 0
        %766 = vmatprep.subr.bf16.mxu0 0
        %767 = vmatpush1.bf16.msra.mxu0 0
        %768 = vmatprep.subr.bf16.mxu0 0
        %769 = vmatpush1.bf16.msra.mxu0 0
        %770 = vmatprep.subr.bf16.mxu0 0
        %771 = vmatpush1.bf16.msra.mxu0 0
        %772 = vmatprep.subr.bf16.mxu0 0
        %773 = vmatpush1.bf16.msra.mxu0 0
        %774 = vmatprep.subr.bf16.mxu0 0
        %775 = vmatpush1.bf16.msra.mxu0 0
        %776 = vmatprep.subr.bf16.mxu0 0
        %777 = vmatpush1.bf16.msra.mxu0 0
        %778 = vmatprep.mubr.bf16.mxu0 0
        %779 = vmatmul.mubr.bf16.gmra.mrb[0].mxu0 %v732
        %v780 = vpop.f32.mrb[0].mxu0
        %v781 = vadd.f32 0.0, %v780
        %v782 = vpop.f32.mrb[0].mxu0
        %v783 = vpop.f32.mrb[0].mxu0
        %v784 = vadd.f32 0.0, %v783
        %v785 = vpop.f32.mrb[0].mxu0
        %786 = vmatprep.mubr.bf16.mxu0 0
        %787 = vmatmul.mubr.bf16.gmra.mrb[0].mxu0 %v735
        %v788 = vpop.f32.mrb[0].mxu0
        %v789 = vadd.f32 0.0, %v788
        %v790 = vpop.f32.mrb[0].mxu0
        %v791 = vpop.f32.mrb[0].mxu0
        %v792 = vadd.f32 0.0, %v791
        %v793 = vpop.f32.mrb[0].mxu0
        %794 = vmatprep.mubr.bf16.mxu0 0
        %795 = vmatmul.mubr.bf16.gmra.mrb[0].mxu0 %v738
        %v796 = vpop.f32.mrb[0].mxu0
        %v797 = vadd.f32 0.0, %v796
        %v798 = vpop.f32.mrb[0].mxu0
        %v799 = vpop.f32.mrb[0].mxu0
        %v800 = vadd.f32 0.0, %v799
        %v801 = vpop.f32.mrb[0].mxu0
        %802 = vmatprep.mubr.bf16.mxu0 0
        %803 = vmatmul.mubr.bf16.gmra.mrb[0].mxu0 %v741
        %v804 = vpop.f32.mrb[0].mxu0
        %v805 = vadd.f32 0.0, %v804
        %v806 = vpop.f32.mrb[0].mxu0
        %v807 = vpop.f32.mrb[0].mxu0
        %v808 = vadd.f32 0.0, %v807
        %v809 = vpop.f32.mrb[0].mxu0
        %810 = vdwg.mxu0
        %v811 = vadd.f32 %v781, 0.0
        %v812 = vadd.f32 %v784, 0.0
        %v813 = vadd.f32 %v789, 0.0
        %v814 = vadd.f32 %v792, 0.0
        %v815 = vadd.f32 %v797, 0.0
        %v816 = vadd.f32 %v800, 0.0
        %v817 = vadd.f32 %v805, 0.0
        %v818 = vadd.f32 %v808, 0.0
        %s819 = scalar_lea.vmem [#allocation5], 20
        %v820 = vld [vmem:[%s819] sm:$0xf]
        %v822 = vsel %vm279, %v820, 0
        %824 = vmatprep.subr.bf16.mxu0 0
        %825 = vmatpush1.bf16.msra.mxu0 %v822
        %826 = vmatprep.subr.bf16.mxu0 0
        %827 = vmatpush1.bf16.msra.mxu0 0
        %828 = vmatprep.subr.bf16.mxu0 0
        %829 = vmatpush1.bf16.msra.mxu0 0
        %830 = vmatprep.subr.bf16.mxu0 0
        %831 = vmatpush1.bf16.msra.mxu0 0
        %832 = vmatprep.subr.bf16.mxu0 0
        %833 = vmatpush1.bf16.msra.mxu0 0
        %834 = vmatprep.subr.bf16.mxu0 0
        %835 = vmatpush1.bf16.msra.mxu0 0
        %836 = vmatprep.subr.bf16.mxu0 0
        %837 = vmatpush1.bf16.msra.mxu0 0
        %838 = vmatprep.subr.bf16.mxu0 0
        %839 = vmatpush1.bf16.msra.mxu0 0
        %840 = vmatprep.subr.bf16.mxu0 0
        %841 = vmatpush1.bf16.msra.mxu0 0
        %842 = vmatprep.subr.bf16.mxu0 0
        %843 = vmatpush1.bf16.msra.mxu0 0
        %844 = vmatprep.subr.bf16.mxu0 0
        %845 = vmatpush1.bf16.msra.mxu0 0
        %846 = vmatprep.subr.bf16.mxu0 0
        %847 = vmatpush1.bf16.msra.mxu0 0
        %848 = vmatprep.subr.bf16.mxu0 0
        %849 = vmatpush1.bf16.msra.mxu0 0
        %850 = vmatprep.subr.bf16.mxu0 0
        %851 = vmatpush1.bf16.msra.mxu0 0
        %852 = vmatprep.subr.bf16.mxu0 0
        %853 = vmatpush1.bf16.msra.mxu0 0
        %854 = vmatprep.subr.bf16.mxu0 0
        %855 = vmatpush1.bf16.msra.mxu0 0
        %856 = vmatprep.mubr.bf16.mxu0 0
        %857 = vmatmul.mubr.bf16.gmra.mrb[0].mxu0 %v732
        %v858 = vpop.f32.mrb[0].mxu0
        %v859 = vadd.f32 0.0, %v858
        %v860 = vpop.f32.mrb[0].mxu0
        %v861 = vpop.f32.mrb[0].mxu0
        %v862 = vadd.f32 0.0, %v861
        %v863 = vpop.f32.mrb[0].mxu0
        %864 = vmatprep.mubr.bf16.mxu0 0
        %865 = vmatmul.mubr.bf16.gmra.mrb[0].mxu0 %v735
        %v866 = vpop.f32.mrb[0].mxu0
        %v867 = vadd.f32 0.0, %v866
        %v868 = vpop.f32.mrb[0].mxu0
        %v869 = vpop.f32.mrb[0].mxu0
        %v870 = vadd.f32 0.0, %v869
        %v871 = vpop.f32.mrb[0].mxu0
        %872 = vmatprep.mubr.bf16.mxu0 0
        %873 = vmatmul.mubr.bf16.gmra.mrb[0].mxu0 %v738
        %v874 = vpop.f32.mrb[0].mxu0
        %v875 = vadd.f32 0.0, %v874
        %v876 = vpop.f32.mrb[0].mxu0
        %v877 = vpop.f32.mrb[0].mxu0
        %v878 = vadd.f32 0.0, %v877
        %v879 = vpop.f32.mrb[0].mxu0
        %880 = vmatprep.mubr.bf16.mxu0 0
        %881 = vmatmul.mubr.bf16.gmra.mrb[0].mxu0 %v741
        %v882 = vpop.f32.mrb[0].mxu0
        %v883 = vadd.f32 0.0, %v882
        %v884 = vpop.f32.mrb[0].mxu0
        %v885 = vpop.f32.mrb[0].mxu0
        %v886 = vadd.f32 0.0, %v885
        %v887 = vpop.f32.mrb[0].mxu0
        %888 = vdwg.mxu0
        %v897 = vrot.slane %v859, 1
        %v898 = vrot.slane %v862, 1
        %v899 = vsel %vm426, %v897, %v898
        %v900 = vrot.slane %v867, 1
        %v901 = vrot.slane %v870, 1
        %v902 = vsel %vm426, %v900, %v901
        %v903 = vrot.slane %v875, 1
        %v904 = vrot.slane %v878, 1
        %v905 = vsel %vm426, %v903, %v904
        %v906 = vrot.slane %v883, 1
        %v907 = vrot.slane %v886, 1
        %v908 = vsel %vm426, %v906, %v907
        %v917 = vadd.f32 %v811, %v899
        %v918 = vadd.f32 %v812, %v898
        %v919 = vadd.f32 %v813, %v902
        %v920 = vadd.f32 %v814, %v901
        %v921 = vadd.f32 %v815, %v905
        %v922 = vadd.f32 %v816, %v904
        %v923 = vadd.f32 %v817, %v908
        %v924 = vadd.f32 %v818, %v907
        %v925 = vld [vmem:[%s450] sm:$0xf]
        %v926 = vld [vmem:[%s450 + $0x4] sm:$0xf]
        %v927 = vld [vmem:[%s450 + $0x8] sm:$0xf]
        %v928 = vld [vmem:[%s450 + $0xc] sm:$0xf]
        %v929 = vld [vmem:[%s450 + $0x10] sm:$0xf]
        %v930 = vld [vmem:[%s450 + $0x14] sm:$0xf]
        %v931 = vld [vmem:[%s450 + $0x18] sm:$0xf]
        %v932 = vld [vmem:[%s450 + $0x1c] sm:$0xf]
        %s933 = scalar_lea.vmem [#allocation5], 24
        %v934 = vld [vmem:[%s933] sm:$0xf]
        %v943 = vunpack.c.l.b16 %v925
        %v944 = vunpack.c.l.b16 %v926
        %v945 = vunpack.c.l.b16 %v927
        %v946 = vunpack.c.l.b16 %v928
        %v947 = vunpack.c.l.b16 %v929
        %v948 = vunpack.c.l.b16 %v930
        %v949 = vunpack.c.l.b16 %v931
        %v950 = vunpack.c.l.b16 %v932
        %v951 = vpack.c.b16 %v944, %v943
        %v952 = vpack.c.b16 %v946, %v945
        %v953 = vpack.c.b16 %v948, %v947
        %v954 = vpack.c.b16 %v950, %v949
        %v956 = vsel %vm266, %v951, 0
        %v959 = vsel %vm266, %v952, 0
        %v962 = vsel %vm266, %v953, 0
        %v965 = vsel %vm266, %v954, 0
        %v968 = vsel %vm279, %v934, 0
        %970 = vmatprep.subr.bf16.mxu0 0
        %971 = vmatpush1.bf16.msra.mxu0 %v968
        %972 = vmatprep.subr.bf16.mxu0 0
        %973 = vmatpush1.bf16.msra.mxu0 0
        %974 = vmatprep.subr.bf16.mxu0 0
        %975 = vmatpush1.bf16.msra.mxu0 0
        %976 = vmatprep.subr.bf16.mxu0 0
        %977 = vmatpush1.bf16.msra.mxu0 0
        %978 = vmatprep.subr.bf16.mxu0 0
        %979 = vmatpush1.bf16.msra.mxu0 0
        %980 = vmatprep.subr.bf16.mxu0 0
        %981 = vmatpush1.bf16.msra.mxu0 0
        %982 = vmatprep.subr.bf16.mxu0 0
        %983 = vmatpush1.bf16.msra.mxu0 0
        %984 = vmatprep.subr.bf16.mxu0 0
        %985 = vmatpush1.bf16.msra.mxu0 0
        %986 = vmatprep.subr.bf16.mxu0 0
        %987 = vmatpush1.bf16.msra.mxu0 0
        %988 = vmatprep.subr.bf16.mxu0 0
        %989 = vmatpush1.bf16.msra.mxu0 0
        %990 = vmatprep.subr.bf16.mxu0 0
        %991 = vmatpush1.bf16.msra.mxu0 0
        %992 = vmatprep.subr.bf16.mxu0 0
        %993 = vmatpush1.bf16.msra.mxu0 0
        %994 = vmatprep.subr.bf16.mxu0 0
        %995 = vmatpush1.bf16.msra.mxu0 0
        %996 = vmatprep.subr.bf16.mxu0 0
        %997 = vmatpush1.bf16.msra.mxu0 0
        %998 = vmatprep.subr.bf16.mxu0 0
        %999 = vmatpush1.bf16.msra.mxu0 0
        %1000 = vmatprep.subr.bf16.mxu0 0
        %1001 = vmatpush1.bf16.msra.mxu0 0
        %1002 = vmatprep.mubr.bf16.mxu0 0
        %1003 = vmatmul.mubr.bf16.gmra.mrb[0].mxu0 %v956
        %v1004 = vpop.f32.mrb[0].mxu0
        %v1005 = vadd.f32 0.0, %v1004
        %v1006 = vpop.f32.mrb[0].mxu0
        %v1007 = vpop.f32.mrb[0].mxu0
        %v1008 = vadd.f32 0.0, %v1007
        %v1009 = vpop.f32.mrb[0].mxu0
        %1010 = vmatprep.mubr.bf16.mxu0 0
        %1011 = vmatmul.mubr.bf16.gmra.mrb[0].mxu0 %v959
        %v1012 = vpop.f32.mrb[0].mxu0
        %v1013 = vadd.f32 0.0, %v1012
        %v1014 = vpop.f32.mrb[0].mxu0
        %v1015 = vpop.f32.mrb[0].mxu0
        %v1016 = vadd.f32 0.0, %v1015
        %v1017 = vpop.f32.mrb[0].mxu0
        %1018 = vmatprep.mubr.bf16.mxu0 0
        %1019 = vmatmul.mubr.bf16.gmra.mrb[0].mxu0 %v962
        %v1020 = vpop.f32.mrb[0].mxu0
        %v1021 = vadd.f32 0.0, %v1020
        %v1022 = vpop.f32.mrb[0].mxu0
        %v1023 = vpop.f32.mrb[0].mxu0
        %v1024 = vadd.f32 0.0, %v1023
        %v1025 = vpop.f32.mrb[0].mxu0
        %1026 = vmatprep.mubr.bf16.mxu0 0
        %1027 = vmatmul.mubr.bf16.gmra.mrb[0].mxu0 %v965
        %v1028 = vpop.f32.mrb[0].mxu0
        %v1029 = vadd.f32 0.0, %v1028
        %v1030 = vpop.f32.mrb[0].mxu0
        %v1031 = vpop.f32.mrb[0].mxu0
        %v1032 = vadd.f32 0.0, %v1031
        %v1033 = vpop.f32.mrb[0].mxu0
        %1034 = vdwg.mxu0
        %v1035 = vadd.f32 %v917, %v1005
        %v1036 = vadd.f32 %v918, %v1008
        %v1037 = vadd.f32 %v919, %v1013
        %v1038 = vadd.f32 %v920, %v1016
        %v1039 = vadd.f32 %v921, %v1021
        %v1040 = vadd.f32 %v922, %v1024
        %v1041 = vadd.f32 %v923, %v1029
        %v1042 = vadd.f32 %v924, %v1032
        %s1043 = scalar_lea.vmem [#allocation5], 28
        %v1044 = vld [vmem:[%s1043] sm:$0xf]
        %v1046 = vsel %vm279, %v1044, 0
        %1048 = vmatprep.subr.bf16.mxu0 0
        %1049 = vmatpush1.bf16.msra.mxu0 %v1046
        %1050 = vmatprep.subr.bf16.mxu0 0
        %1051 = vmatpush1.bf16.msra.mxu0 0
        %1052 = vmatprep.subr.bf16.mxu0 0
        %1053 = vmatpush1.bf16.msra.mxu0 0
        %1054 = vmatprep.subr.bf16.mxu0 0
        %1055 = vmatpush1.bf16.msra.mxu0 0
        %1056 = vmatprep.subr.bf16.mxu0 0
        %1057 = vmatpush1.bf16.msra.mxu0 0
        %1058 = vmatprep.subr.bf16.mxu0 0
        %1059 = vmatpush1.bf16.msra.mxu0 0
        %1060 = vmatprep.subr.bf16.mxu0 0
        %1061 = vmatpush1.bf16.msra.mxu0 0
        %1062 = vmatprep.subr.bf16.mxu0 0
        %1063 = vmatpush1.bf16.msra.mxu0 0
        %1064 = vmatprep.subr.bf16.mxu0 0
        %1065 = vmatpush1.bf16.msra.mxu0 0
        %1066 = vmatprep.subr.bf16.mxu0 0
        %1067 = vmatpush1.bf16.msra.mxu0 0
        %1068 = vmatprep.subr.bf16.mxu0 0
        %1069 = vmatpush1.bf16.msra.mxu0 0
        %1070 = vmatprep.subr.bf16.mxu0 0
        %1071 = vmatpush1.bf16.msra.mxu0 0
        %1072 = vmatprep.subr.bf16.mxu0 0
        %1073 = vmatpush1.bf16.msra.mxu0 0
        %1074 = vmatprep.subr.bf16.mxu0 0
        %1075 = vmatpush1.bf16.msra.mxu0 0
        %1076 = vmatprep.subr.bf16.mxu0 0
        %1077 = vmatpush1.bf16.msra.mxu0 0
        %1078 = vmatprep.subr.bf16.mxu0 0
        %1079 = vmatpush1.bf16.msra.mxu0 0
        %1080 = vmatprep.mubr.bf16.mxu0 0
        %1081 = vmatmul.mubr.bf16.gmra.mrb[0].mxu0 %v956
        %v1082 = vpop.f32.mrb[0].mxu0
        %v1083 = vadd.f32 0.0, %v1082
        %v1084 = vpop.f32.mrb[0].mxu0
        %v1085 = vpop.f32.mrb[0].mxu0
        %v1086 = vadd.f32 0.0, %v1085
        %v1087 = vpop.f32.mrb[0].mxu0
        %1088 = vmatprep.mubr.bf16.mxu0 0
        %1089 = vmatmul.mubr.bf16.gmra.mrb[0].mxu0 %v959
        %v1090 = vpop.f32.mrb[0].mxu0
        %v1091 = vadd.f32 0.0, %v1090
        %v1092 = vpop.f32.mrb[0].mxu0
        %v1093 = vpop.f32.mrb[0].mxu0
        %v1094 = vadd.f32 0.0, %v1093
        %v1095 = vpop.f32.mrb[0].mxu0
        %1096 = vmatprep.mubr.bf16.mxu0 0
        %1097 = vmatmul.mubr.bf16.gmra.mrb[0].mxu0 %v962
        %v1098 = vpop.f32.mrb[0].mxu0
        %v1099 = vadd.f32 0.0, %v1098
        %v1100 = vpop.f32.mrb[0].mxu0
        %v1101 = vpop.f32.mrb[0].mxu0
        %v1102 = vadd.f32 0.0, %v1101
        %v1103 = vpop.f32.mrb[0].mxu0
        %1104 = vmatprep.mubr.bf16.mxu0 0
        %1105 = vmatmul.mubr.bf16.gmra.mrb[0].mxu0 %v965
        %v1106 = vpop.f32.mrb[0].mxu0
        %v1107 = vadd.f32 0.0, %v1106
        %v1108 = vpop.f32.mrb[0].mxu0
        %v1109 = vpop.f32.mrb[0].mxu0
        %v1110 = vadd.f32 0.0, %v1109
        %v1111 = vpop.f32.mrb[0].mxu0
        %1112 = vdwg.mxu0
        %v1121 = vrot.slane %v1083, 1
        %v1122 = vrot.slane %v1086, 1
        %v1123 = vsel %vm426, %v1121, %v1122
        %v1124 = vrot.slane %v1091, 1
        %v1125 = vrot.slane %v1094, 1
        %v1126 = vsel %vm426, %v1124, %v1125
        %v1127 = vrot.slane %v1099, 1
        %v1128 = vrot.slane %v1102, 1
        %v1129 = vsel %vm426, %v1127, %v1128
        %v1130 = vrot.slane %v1107, 1
        %v1131 = vrot.slane %v1110, 1
        %v1132 = vsel %vm426, %v1130, %v1131
        %v1141 = vadd.f32 %v1035, %v1123
        %v1142 = vadd.f32 %v1036, %v1122
        %v1143 = vadd.f32 %v1037, %v1126
        %v1144 = vadd.f32 %v1038, %v1125
        %v1145 = vadd.f32 %v1039, %v1129
        %v1146 = vadd.f32 %v1040, %v1128
        %v1147 = vadd.f32 %v1041, %v1132
        %v1148 = vadd.f32 %v1042, %v1131
        %v1149 = vpack.c.bf16 %v1142, %v1141
        %v1150 = vpack.c.bf16 %v1144, %v1143
        %v1151 = vpack.c.bf16 %v1146, %v1145
        %v1152 = vpack.c.bf16 %v1148, %v1147
        %v1157 = vunpack.c.l.b16 %v1149
        %v1158 = vunpack.c.h.b16 %v1149
        %v1159 = vunpack.c.l.b16 %v1150
        %v1160 = vunpack.c.h.b16 %v1150
        %v1161 = vunpack.c.l.b16 %v1151
        %v1162 = vunpack.c.h.b16 %v1151
        %v1163 = vunpack.c.l.b16 %v1152
        %v1164 = vunpack.c.h.b16 %v1152
        %v1165 = vpack.c.b16 %v1157, %v1157
        %v1166 = vpack.c.b16 %v1158, %v1158
        %v1167 = vpack.c.b16 %v1159, %v1159
        %v1168 = vpack.c.b16 %v1160, %v1160
        %v1169 = vpack.c.b16 %v1161, %v1161
        %v1170 = vpack.c.b16 %v1162, %v1162
        %v1171 = vpack.c.b16 %v1163, %v1163
        %v1172 = vpack.c.b16 %v1164, %v1164
        %vm1173 = vsmask.f32 3328
        %vm1174 = vsmask.f32 7440
        %vm1175 = vmor %vm1173, %vm1174
        %v1177 = vshrl.u32 %v1165, 16
        %v1179 = vrot.slane %v1177, 4
        %v1180 = vshll.u32 %v1165, 16
        %v1182 = vrot.slane %v1180, 5
        %v1183 = vor.u32 %v1179, %v1182
        %v1184 = vrot.slane %v1183, 4
        %v1186 = vshll.u32 %v1166, 16
        %v1188 = vrot.slane %v1186, 5
        %v1189 = vsel %vm1175, %v1184, %v1188
        %v1191 = vshrl.u32 %v1167, 16
        %v1193 = vrot.slane %v1191, 4
        %v1194 = vshll.u32 %v1167, 16
        %v1196 = vrot.slane %v1194, 5
        %v1197 = vor.u32 %v1193, %v1196
        %v1198 = vrot.slane %v1197, 4
        %v1200 = vshll.u32 %v1168, 16
        %v1202 = vrot.slane %v1200, 5
        %v1203 = vsel %vm1175, %v1198, %v1202
        %v1205 = vshrl.u32 %v1169, 16
        %v1207 = vrot.slane %v1205, 4
        %v1208 = vshll.u32 %v1169, 16
        %v1210 = vrot.slane %v1208, 5
        %v1211 = vor.u32 %v1207, %v1210
        %v1212 = vrot.slane %v1211, 4
        %v1214 = vshll.u32 %v1170, 16
        %v1216 = vrot.slane %v1214, 5
        %v1217 = vsel %vm1175, %v1212, %v1216
        %v1219 = vshrl.u32 %v1171, 16
        %v1221 = vrot.slane %v1219, 4
        %v1222 = vshll.u32 %v1171, 16
        %v1224 = vrot.slane %v1222, 5
        %v1225 = vor.u32 %v1221, %v1224
        %v1226 = vrot.slane %v1225, 4
        %v1228 = vshll.u32 %v1172, 16
        %v1230 = vrot.slane %v1228, 5
        %v1231 = vsel %vm1175, %v1226, %v1230
        %s1236 = scalar_lea.vmem %s223, 16 [#allocation7]
        %1237 = vst.msk [vmem:[%s1236] sm:$0xf] %vm663, %v1189
        %1238 = vst.msk [vmem:[%s1236 + $0x4] sm:$0xf] %vm663, %v1203
        %1239 = vst.msk [vmem:[%s1236 + $0x8] sm:$0xf] %vm663, %v1217
        %1240 = vst.msk [vmem:[%s1236 + $0xc] sm:$0xf] %vm663, %v1231
        %v1249 = vrot.slane %v1141, 1
        %v1250 = vrot.slane %v1142, 1
        %v1251 = vsel %vm426, %v1249, %v1250
        %v1252 = vrot.slane %v1143, 1
        %v1253 = vrot.slane %v1144, 1
        %v1254 = vsel %vm426, %v1252, %v1253
        %v1255 = vrot.slane %v1145, 1
        %v1256 = vrot.slane %v1146, 1
        %v1257 = vsel %vm426, %v1255, %v1256
        %v1258 = vrot.slane %v1147, 1
        %v1259 = vrot.slane %v1148, 1
        %v1260 = vsel %vm426, %v1258, %v1259
        %v1265 = vsel %vm668, %v1251, 0.0
        %v1266 = vsel %vm668, %v1254, 0.0
        %v1267 = vadd.f32 %v1265, %v1266
        %v1268 = vsel %vm668, %v1257, 0.0
        %v1269 = vadd.f32 %v1267, %v1268
        %v1270 = vsel %vm668, %v1260, 0.0
        %v1271 = vadd.f32 %v1269, %v1270
        %v1272 = vrot.slane %v1271, 4
        %v1273 = vadd.f32 %v1271, %v1272
        %v1274 = vrot.slane %v1273, 2
        %v1275 = vadd.f32 %v1273, %v1274
        %v1276 = vrot.slane %v1275, 1
        %v1277 = vadd.f32 %v1275, %v1276
        %v1278 = vadd.f32 %v682, %v1277
        %v1279 = vmul.f32 %v1251, %v1251
        %v1280 = vmul.f32 %v1254, %v1254
        %v1281 = vmul.f32 %v1257, %v1257
        %v1282 = vmul.f32 %v1260, %v1260
        %v1283 = vsel %vm668, %v1279, 0.0
        %v1284 = vsel %vm668, %v1280, 0.0
        %v1285 = vadd.f32 %v1283, %v1284
        %v1286 = vsel %vm668, %v1281, 0.0
        %v1287 = vadd.f32 %v1285, %v1286
        %v1288 = vsel %vm668, %v1282, 0.0
        %v1289 = vadd.f32 %v1287, %v1288
        %v1290 = vrot.slane %v1289, 4
        %v1291 = vadd.f32 %v1289, %v1290
        %v1292 = vrot.slane %v1291, 2
        %v1293 = vadd.f32 %v1291, %v1292
        %v1294 = vrot.slane %v1293, 1
        %v1295 = vadd.f32 %v1293, %v1294
        %v1296 = vadd.f32 %v700, %v1295
        %v1297 = vld [vmem:[%s450] sm:$0xf]
        %v1298 = vld [vmem:[%s450 + $0x4] sm:$0xf]
        %v1299 = vld [vmem:[%s450 + $0x8] sm:$0xf]
        %v1300 = vld [vmem:[%s450 + $0xc] sm:$0xf]
        %v1301 = vld [vmem:[%s450 + $0x10] sm:$0xf]
        %v1302 = vld [vmem:[%s450 + $0x14] sm:$0xf]
        %v1303 = vld [vmem:[%s450 + $0x18] sm:$0xf]
        %v1304 = vld [vmem:[%s450 + $0x1c] sm:$0xf]
        %s1305 = scalar_lea.vmem [#allocation5], 32
        %v1306 = vld [vmem:[%s1305] sm:$0xf]
        %v1315 = vunpack.c.l.b16 %v1297
        %v1316 = vunpack.c.l.b16 %v1298
        %v1317 = vunpack.c.l.b16 %v1299
        %v1318 = vunpack.c.l.b16 %v1300
        %v1319 = vunpack.c.l.b16 %v1301
        %v1320 = vunpack.c.l.b16 %v1302
        %v1321 = vunpack.c.l.b16 %v1303
        %v1322 = vunpack.c.l.b16 %v1304
        %v1323 = vpack.c.b16 %v1316, %v1315
        %v1324 = vpack.c.b16 %v1318, %v1317
        %v1325 = vpack.c.b16 %v1320, %v1319
        %v1326 = vpack.c.b16 %v1322, %v1321
        %v1328 = vsel %vm266, %v1323, 0
        %v1331 = vsel %vm266, %v1324, 0
        %v1334 = vsel %vm266, %v1325, 0
        %v1337 = vsel %vm266, %v1326, 0
        %v1340 = vsel %vm279, %v1306, 0
        %1342 = vmatprep.subr.bf16.mxu0 0
        %1343 = vmatpush1.bf16.msra.mxu0 %v1340
        %1344 = vmatprep.subr.bf16.mxu0 0
        %1345 = vmatpush1.bf16.msra.mxu0 0
        %1346 = vmatprep.subr.bf16.mxu0 0
        %1347 = vmatpush1.bf16.msra.mxu0 0
        %1348 = vmatprep.subr.bf16.mxu0 0
        %1349 = vmatpush1.bf16.msra.mxu0 0
        %1350 = vmatprep.subr.bf16.mxu0 0
        %1351 = vmatpush1.bf16.msra.mxu0 0
        %1352 = vmatprep.subr.bf16.mxu0 0
        %1353 = vmatpush1.bf16.msra.mxu0 0
        %1354 = vmatprep.subr.bf16.mxu0 0
        %1355 = vmatpush1.bf16.msra.mxu0 0
        %1356 = vmatprep.subr.bf16.mxu0 0
        %1357 = vmatpush1.bf16.msra.mxu0 0
        %1358 = vmatprep.subr.bf16.mxu0 0
        %1359 = vmatpush1.bf16.msra.mxu0 0
        %1360 = vmatprep.subr.bf16.mxu0 0
        %1361 = vmatpush1.bf16.msra.mxu0 0
        %1362 = vmatprep.subr.bf16.mxu0 0
        %1363 = vmatpush1.bf16.msra.mxu0 0
        %1364 = vmatprep.subr.bf16.mxu0 0
        %1365 = vmatpush1.bf16.msra.mxu0 0
        %1366 = vmatprep.subr.bf16.mxu0 0
        %1367 = vmatpush1.bf16.msra.mxu0 0
        %1368 = vmatprep.subr.bf16.mxu0 0
        %1369 = vmatpush1.bf16.msra.mxu0 0
        %1370 = vmatprep.subr.bf16.mxu0 0
        %1371 = vmatpush1.bf16.msra.mxu0 0
        %1372 = vmatprep.subr.bf16.mxu0 0
        %1373 = vmatpush1.bf16.msra.mxu0 0
        %1374 = vmatprep.mubr.bf16.mxu0 0
        %1375 = vmatmul.mubr.bf16.gmra.mrb[0].mxu0 %v1328
        %v1376 = vpop.f32.mrb[0].mxu0
        %v1377 = vadd.f32 0.0, %v1376
        %v1378 = vpop.f32.mrb[0].mxu0
        %v1379 = vpop.f32.mrb[0].mxu0
        %v1380 = vpop.f32.mrb[0].mxu0
        %1381 = vmatprep.mubr.bf16.mxu0 0
        %1382 = vmatmul.mubr.bf16.gmra.mrb[0].mxu0 %v1331
        %v1383 = vpop.f32.mrb[0].mxu0
        %v1384 = vadd.f32 0.0, %v1383
        %v1385 = vpop.f32.mrb[0].mxu0
        %v1386 = vpop.f32.mrb[0].mxu0
        %v1387 = vpop.f32.mrb[0].mxu0
        %1388 = vmatprep.mubr.bf16.mxu0 0
        %1389 = vmatmul.mubr.bf16.gmra.mrb[0].mxu0 %v1334
        %v1390 = vpop.f32.mrb[0].mxu0
        %v1391 = vadd.f32 0.0, %v1390
        %v1392 = vpop.f32.mrb[0].mxu0
        %v1393 = vpop.f32.mrb[0].mxu0
        %v1394 = vpop.f32.mrb[0].mxu0
        %1395 = vmatprep.mubr.bf16.mxu0 0
        %1396 = vmatmul.mubr.bf16.gmra.mrb[0].mxu0 %v1337
        %v1397 = vpop.f32.mrb[0].mxu0
        %v1398 = vadd.f32 0.0, %v1397
        %v1399 = vpop.f32.mrb[0].mxu0
        %v1400 = vpop.f32.mrb[0].mxu0
        %v1401 = vpop.f32.mrb[0].mxu0
        %1402 = vdwg.mxu0
        %v1403 = vadd.f32 %v1377, 0.0
        %v1404 = vadd.f32 %v1384, 0.0
        %v1405 = vadd.f32 %v1391, 0.0
        %v1406 = vadd.f32 %v1398, 0.0
        %s1407 = scalar_lea.vmem [#allocation5], 36
        %v1408 = vld [vmem:[%s1407] sm:$0xf]
        %v1410 = vsel %vm279, %v1408, 0
        %1412 = vmatprep.subr.bf16.mxu0 0
        %1413 = vmatpush1.bf16.msra.mxu0 %v1410
        %1414 = vmatprep.subr.bf16.mxu0 0
        %1415 = vmatpush1.bf16.msra.mxu0 0
        %1416 = vmatprep.subr.bf16.mxu0 0
        %1417 = vmatpush1.bf16.msra.mxu0 0
        %1418 = vmatprep.subr.bf16.mxu0 0
        %1419 = vmatpush1.bf16.msra.mxu0 0
        %1420 = vmatprep.subr.bf16.mxu0 0
        %1421 = vmatpush1.bf16.msra.mxu0 0
        %1422 = vmatprep.subr.bf16.mxu0 0
        %1423 = vmatpush1.bf16.msra.mxu0 0
        %1424 = vmatprep.subr.bf16.mxu0 0
        %1425 = vmatpush1.bf16.msra.mxu0 0
        %1426 = vmatprep.subr.bf16.mxu0 0
        %1427 = vmatpush1.bf16.msra.mxu0 0
        %1428 = vmatprep.subr.bf16.mxu0 0
        %1429 = vmatpush1.bf16.msra.mxu0 0
        %1430 = vmatprep.subr.bf16.mxu0 0
        %1431 = vmatpush1.bf16.msra.mxu0 0
        %1432 = vmatprep.subr.bf16.mxu0 0
        %1433 = vmatpush1.bf16.msra.mxu0 0
        %1434 = vmatprep.subr.bf16.mxu0 0
        %1435 = vmatpush1.bf16.msra.mxu0 0
        %1436 = vmatprep.subr.bf16.mxu0 0
        %1437 = vmatpush1.bf16.msra.mxu0 0
        %1438 = vmatprep.subr.bf16.mxu0 0
        %1439 = vmatpush1.bf16.msra.mxu0 0
        %1440 = vmatprep.subr.bf16.mxu0 0
        %1441 = vmatpush1.bf16.msra.mxu0 0
        %1442 = vmatprep.subr.bf16.mxu0 0
        %1443 = vmatpush1.bf16.msra.mxu0 0
        %1444 = vmatprep.mubr.bf16.mxu0 0
        %1445 = vmatmul.mubr.bf16.gmra.mrb[0].mxu0 %v1328
        %v1446 = vpop.f32.mrb[0].mxu0
        %v1447 = vadd.f32 0.0, %v1446
        %v1448 = vpop.f32.mrb[0].mxu0
        %v1449 = vpop.f32.mrb[0].mxu0
        %v1450 = vadd.f32 0.0, %v1449
        %v1451 = vpop.f32.mrb[0].mxu0
        %1452 = vmatprep.mubr.bf16.mxu0 0
        %1453 = vmatmul.mubr.bf16.gmra.mrb[0].mxu0 %v1331
        %v1454 = vpop.f32.mrb[0].mxu0
        %v1455 = vadd.f32 0.0, %v1454
        %v1456 = vpop.f32.mrb[0].mxu0
        %v1457 = vpop.f32.mrb[0].mxu0
        %v1458 = vadd.f32 0.0, %v1457
        %v1459 = vpop.f32.mrb[0].mxu0
        %1460 = vmatprep.mubr.bf16.mxu0 0
        %1461 = vmatmul.mubr.bf16.gmra.mrb[0].mxu0 %v1334
        %v1462 = vpop.f32.mrb[0].mxu0
        %v1463 = vadd.f32 0.0, %v1462
        %v1464 = vpop.f32.mrb[0].mxu0
        %v1465 = vpop.f32.mrb[0].mxu0
        %v1466 = vadd.f32 0.0, %v1465
        %v1467 = vpop.f32.mrb[0].mxu0
        %1468 = vmatprep.mubr.bf16.mxu0 0
        %1469 = vmatmul.mubr.bf16.gmra.mrb[0].mxu0 %v1337
        %v1470 = vpop.f32.mrb[0].mxu0
        %v1471 = vadd.f32 0.0, %v1470
        %v1472 = vpop.f32.mrb[0].mxu0
        %v1473 = vpop.f32.mrb[0].mxu0
        %v1474 = vadd.f32 0.0, %v1473
        %v1475 = vpop.f32.mrb[0].mxu0
        %1476 = vdwg.mxu0
        %v1485 = vrot.slane %v1447, 1
        %v1486 = vrot.slane %v1450, 1
        %v1487 = vsel %vm426, %v1485, %v1486
        %v1488 = vrot.slane %v1455, 1
        %v1489 = vrot.slane %v1458, 1
        %v1490 = vsel %vm426, %v1488, %v1489
        %v1491 = vrot.slane %v1463, 1
        %v1492 = vrot.slane %v1466, 1
        %v1493 = vsel %vm426, %v1491, %v1492
        %v1494 = vrot.slane %v1471, 1
        %v1495 = vrot.slane %v1474, 1
        %v1496 = vsel %vm426, %v1494, %v1495
        %v1501 = vadd.f32 %v1403, %v1487
        %v1502 = vadd.f32 %v1404, %v1490
        %v1503 = vadd.f32 %v1405, %v1493
        %v1504 = vadd.f32 %v1406, %v1496
        %s1505 = sadd.s32 %s233, 2
        %s1506 = smul.u32 %s1505, 2
        %s1507 = smul.addr %s1506, 4
        %s1508 = scalar_lea.vmem %s199, %s1507 [#allocation2]
        %v1509 = vld [vmem:[%s1508] sm:$0xf]
        %v1510 = vld [vmem:[%s1508 + $0x4] sm:$0xf]
        %v1511 = vld [vmem:[%s1508 + $0x8] sm:$0xf]
        %v1512 = vld [vmem:[%s1508 + $0xc] sm:$0xf]
        %v1513 = vld [vmem:[%s1508 + $0x10] sm:$0xf]
        %v1514 = vld [vmem:[%s1508 + $0x14] sm:$0xf]
        %v1515 = vld [vmem:[%s1508 + $0x18] sm:$0xf]
        %v1516 = vld [vmem:[%s1508 + $0x1c] sm:$0xf]
        %s1517 = scalar_lea.vmem [#allocation5], 40
        %v1518 = vld [vmem:[%s1517] sm:$0xf]
        %v1527 = vunpack.c.l.b16 %v1509
        %v1528 = vunpack.c.l.b16 %v1510
        %v1529 = vunpack.c.l.b16 %v1511
        %v1530 = vunpack.c.l.b16 %v1512
        %v1531 = vunpack.c.l.b16 %v1513
        %v1532 = vunpack.c.l.b16 %v1514
        %v1533 = vunpack.c.l.b16 %v1515
        %v1534 = vunpack.c.l.b16 %v1516
        %v1535 = vpack.c.b16 %v1528, %v1527
        %v1536 = vpack.c.b16 %v1530, %v1529
        %v1537 = vpack.c.b16 %v1532, %v1531
        %v1538 = vpack.c.b16 %v1534, %v1533
        %v1540 = vsel %vm266, %v1535, 0
        %v1543 = vsel %vm266, %v1536, 0
        %v1546 = vsel %vm266, %v1537, 0
        %v1549 = vsel %vm266, %v1538, 0
        %v1552 = vsel %vm279, %v1518, 0
        %1554 = vmatprep.subr.bf16.mxu0 0
        %1555 = vmatpush1.bf16.msra.mxu0 %v1552
        %1556 = vmatprep.subr.bf16.mxu0 0
        %1557 = vmatpush1.bf16.msra.mxu0 0
        %1558 = vmatprep.subr.bf16.mxu0 0
        %1559 = vmatpush1.bf16.msra.mxu0 0
        %1560 = vmatprep.subr.bf16.mxu0 0
        %1561 = vmatpush1.bf16.msra.mxu0 0
        %1562 = vmatprep.subr.bf16.mxu0 0
        %1563 = vmatpush1.bf16.msra.mxu0 0
        %1564 = vmatprep.subr.bf16.mxu0 0
        %1565 = vmatpush1.bf16.msra.mxu0 0
        %1566 = vmatprep.subr.bf16.mxu0 0
        %1567 = vmatpush1.bf16.msra.mxu0 0
        %1568 = vmatprep.subr.bf16.mxu0 0
        %1569 = vmatpush1.bf16.msra.mxu0 0
        %1570 = vmatprep.subr.bf16.mxu0 0
        %1571 = vmatpush1.bf16.msra.mxu0 0
        %1572 = vmatprep.subr.bf16.mxu0 0
        %1573 = vmatpush1.bf16.msra.mxu0 0
        %1574 = vmatprep.subr.bf16.mxu0 0
        %1575 = vmatpush1.bf16.msra.mxu0 0
        %1576 = vmatprep.subr.bf16.mxu0 0
        %1577 = vmatpush1.bf16.msra.mxu0 0
        %1578 = vmatprep.subr.bf16.mxu0 0
        %1579 = vmatpush1.bf16.msra.mxu0 0
        %1580 = vmatprep.subr.bf16.mxu0 0
        %1581 = vmatpush1.bf16.msra.mxu0 0
        %1582 = vmatprep.subr.bf16.mxu0 0
        %1583 = vmatpush1.bf16.msra.mxu0 0
        %1584 = vmatprep.subr.bf16.mxu0 0
        %1585 = vmatpush1.bf16.msra.mxu0 0
        %1586 = vmatprep.mubr.bf16.mxu0 0
        %1587 = vmatmul.mubr.bf16.gmra.mrb[0].mxu0 %v1540
        %v1588 = vpop.f32.mrb[0].mxu0
        %v1589 = vadd.f32 0.0, %v1588
        %v1590 = vpop.f32.mrb[0].mxu0
        %v1591 = vpop.f32.mrb[0].mxu0
        %v1592 = vpop.f32.mrb[0].mxu0
        %1593 = vmatprep.mubr.bf16.mxu0 0
        %1594 = vmatmul.mubr.bf16.gmra.mrb[0].mxu0 %v1543
        %v1595 = vpop.f32.mrb[0].mxu0
        %v1596 = vadd.f32 0.0, %v1595
        %v1597 = vpop.f32.mrb[0].mxu0
        %v1598 = vpop.f32.mrb[0].mxu0
        %v1599 = vpop.f32.mrb[0].mxu0
        %1600 = vmatprep.mubr.bf16.mxu0 0
        %1601 = vmatmul.mubr.bf16.gmra.mrb[0].mxu0 %v1546
        %v1602 = vpop.f32.mrb[0].mxu0
        %v1603 = vadd.f32 0.0, %v1602
        %v1604 = vpop.f32.mrb[0].mxu0
        %v1605 = vpop.f32.mrb[0].mxu0
        %v1606 = vpop.f32.mrb[0].mxu0
        %1607 = vmatprep.mubr.bf16.mxu0 0
        %1608 = vmatmul.mubr.bf16.gmra.mrb[0].mxu0 %v1549
        %v1609 = vpop.f32.mrb[0].mxu0
        %v1610 = vadd.f32 0.0, %v1609
        %v1611 = vpop.f32.mrb[0].mxu0
        %v1612 = vpop.f32.mrb[0].mxu0
        %v1613 = vpop.f32.mrb[0].mxu0
        %1614 = vdwg.mxu0
        %v1615 = vadd.f32 %v1501, %v1589
        %v1616 = vadd.f32 %v1502, %v1596
        %v1617 = vadd.f32 %v1503, %v1603
        %v1618 = vadd.f32 %v1504, %v1610
        %s1619 = scalar_lea.vmem [#allocation5], 44
        %v1620 = vld [vmem:[%s1619] sm:$0xf]
        %v1622 = vsel %vm279, %v1620, 0
        %1624 = vmatprep.subr.bf16.mxu0 0
        %1625 = vmatpush1.bf16.msra.mxu0 %v1622
        %1626 = vmatprep.subr.bf16.mxu0 0
        %1627 = vmatpush1.bf16.msra.mxu0 0
        %1628 = vmatprep.subr.bf16.mxu0 0
        %1629 = vmatpush1.bf16.msra.mxu0 0
        %1630 = vmatprep.subr.bf16.mxu0 0
        %1631 = vmatpush1.bf16.msra.mxu0 0
        %1632 = vmatprep.subr.bf16.mxu0 0
        %1633 = vmatpush1.bf16.msra.mxu0 0
        %1634 = vmatprep.subr.bf16.mxu0 0
        %1635 = vmatpush1.bf16.msra.mxu0 0
        %1636 = vmatprep.subr.bf16.mxu0 0
        %1637 = vmatpush1.bf16.msra.mxu0 0
        %1638 = vmatprep.subr.bf16.mxu0 0
        %1639 = vmatpush1.bf16.msra.mxu0 0
        %1640 = vmatprep.subr.bf16.mxu0 0
        %1641 = vmatpush1.bf16.msra.mxu0 0
        %1642 = vmatprep.subr.bf16.mxu0 0
        %1643 = vmatpush1.bf16.msra.mxu0 0
        %1644 = vmatprep.subr.bf16.mxu0 0
        %1645 = vmatpush1.bf16.msra.mxu0 0
        %1646 = vmatprep.subr.bf16.mxu0 0
        %1647 = vmatpush1.bf16.msra.mxu0 0
        %1648 = vmatprep.subr.bf16.mxu0 0
        %1649 = vmatpush1.bf16.msra.mxu0 0
        %1650 = vmatprep.subr.bf16.mxu0 0
        %1651 = vmatpush1.bf16.msra.mxu0 0
        %1652 = vmatprep.subr.bf16.mxu0 0
        %1653 = vmatpush1.bf16.msra.mxu0 0
        %1654 = vmatprep.subr.bf16.mxu0 0
        %1655 = vmatpush1.bf16.msra.mxu0 0
        %1656 = vmatprep.mubr.bf16.mxu0 0
        %1657 = vmatmul.mubr.bf16.gmra.mrb[0].mxu0 %v1540
        %v1658 = vpop.f32.mrb[0].mxu0
        %v1659 = vadd.f32 0.0, %v1658
        %v1660 = vpop.f32.mrb[0].mxu0
        %v1661 = vpop.f32.mrb[0].mxu0
        %v1662 = vadd.f32 0.0, %v1661
        %v1663 = vpop.f32.mrb[0].mxu0
        %1664 = vmatprep.mubr.bf16.mxu0 0
        %1665 = vmatmul.mubr.bf16.gmra.mrb[0].mxu0 %v1543
        %v1666 = vpop.f32.mrb[0].mxu0
        %v1667 = vadd.f32 0.0, %v1666
        %v1668 = vpop.f32.mrb[0].mxu0
        %v1669 = vpop.f32.mrb[0].mxu0
        %v1670 = vadd.f32 0.0, %v1669
        %v1671 = vpop.f32.mrb[0].mxu0
        %1672 = vmatprep.mubr.bf16.mxu0 0
        %1673 = vmatmul.mubr.bf16.gmra.mrb[0].mxu0 %v1546
        %v1674 = vpop.f32.mrb[0].mxu0
        %v1675 = vadd.f32 0.0, %v1674
        %v1676 = vpop.f32.mrb[0].mxu0
        %v1677 = vpop.f32.mrb[0].mxu0
        %v1678 = vadd.f32 0.0, %v1677
        %v1679 = vpop.f32.mrb[0].mxu0
        %1680 = vmatprep.mubr.bf16.mxu0 0
        %1681 = vmatmul.mubr.bf16.gmra.mrb[0].mxu0 %v1549
        %v1682 = vpop.f32.mrb[0].mxu0
        %v1683 = vadd.f32 0.0, %v1682
        %v1684 = vpop.f32.mrb[0].mxu0
        %v1685 = vpop.f32.mrb[0].mxu0
        %v1686 = vadd.f32 0.0, %v1685
        %v1687 = vpop.f32.mrb[0].mxu0
        %1688 = vdwg.mxu0
        %v1697 = vrot.slane %v1659, 1
        %v1698 = vrot.slane %v1662, 1
        %v1699 = vsel %vm426, %v1697, %v1698
        %v1700 = vrot.slane %v1667, 1
        %v1701 = vrot.slane %v1670, 1
        %v1702 = vsel %vm426, %v1700, %v1701
        %v1703 = vrot.slane %v1675, 1
        %v1704 = vrot.slane %v1678, 1
        %v1705 = vsel %vm426, %v1703, %v1704
        %v1706 = vrot.slane %v1683, 1
        %v1707 = vrot.slane %v1686, 1
        %v1708 = vsel %vm426, %v1706, %v1707
        %v1713 = vadd.f32 %v1615, %v1699
        %v1714 = vadd.f32 %v1616, %v1702
        %v1715 = vadd.f32 %v1617, %v1705
        %v1716 = vadd.f32 %v1618, %v1708
        %v1717 = vpack.c.bf16 %v1713, %v1713
        %v1718 = vpack.c.bf16 %v1714, %v1714
        %v1719 = vpack.c.bf16 %v1715, %v1715
        %v1720 = vpack.c.bf16 %v1716, %v1716
        %s1721 = scalar_lea.vmem %s223, 32 [#allocation7]
        %1722 = vst.msk [vmem:[%s1721] sm:$0xf] %vm663, %v1717
        %1723 = vst.msk [vmem:[%s1721 + $0x4] sm:$0xf] %vm663, %v1718
        %1724 = vst.msk [vmem:[%s1721 + $0x8] sm:$0xf] %vm663, %v1719
        %1725 = vst.msk [vmem:[%s1721 + $0xc] sm:$0xf] %vm663, %v1720
        %v1726 = vsel %vm668, %v1713, 0.0
        %v1727 = vsel %vm668, %v1714, 0.0
        %v1728 = vadd.f32 %v1726, %v1727
        %v1729 = vsel %vm668, %v1715, 0.0
        %v1730 = vadd.f32 %v1728, %v1729
        %v1731 = vsel %vm668, %v1716, 0.0
        %v1732 = vadd.f32 %v1730, %v1731
        %v1733 = vrot.slane %v1732, 4
        %v1734 = vadd.f32 %v1732, %v1733
        %v1735 = vrot.slane %v1734, 2
        %v1736 = vadd.f32 %v1734, %v1735
        %v1737 = vrot.slane %v1736, 1
        %v1738 = vadd.f32 %v1736, %v1737
        %v1739 = vadd.f32 %v1278, %v1738
        %v1740 = vmul.f32 %v1713, %v1713
        %v1741 = vmul.f32 %v1714, %v1714
        %v1742 = vmul.f32 %v1715, %v1715
        %v1743 = vmul.f32 %v1716, %v1716
        %v1744 = vsel %vm668, %v1740, 0.0
        %v1745 = vsel %vm668, %v1741, 0.0
        %v1746 = vadd.f32 %v1744, %v1745
        %v1747 = vsel %vm668, %v1742, 0.0
        %v1748 = vadd.f32 %v1746, %v1747
        %v1749 = vsel %vm668, %v1743, 0.0
        %v1750 = vadd.f32 %v1748, %v1749
        %v1751 = vrot.slane %v1750, 4
        %v1752 = vadd.f32 %v1750, %v1751
        %v1753 = vrot.slane %v1752, 2
        %v1754 = vadd.f32 %v1752, %v1753
        %v1755 = vrot.slane %v1754, 1
        %v1756 = vadd.f32 %v1754, %v1755
        %v1757 = vadd.f32 %v1296, %v1756
        %v1758 = vld [vmem:[%s450] sm:$0xf]
        %v1759 = vld [vmem:[%s450 + $0x4] sm:$0xf]
        %v1760 = vld [vmem:[%s450 + $0x8] sm:$0xf]
        %v1761 = vld [vmem:[%s450 + $0xc] sm:$0xf]
        %v1762 = vld [vmem:[%s450 + $0x10] sm:$0xf]
        %v1763 = vld [vmem:[%s450 + $0x14] sm:$0xf]
        %v1764 = vld [vmem:[%s450 + $0x18] sm:$0xf]
        %v1765 = vld [vmem:[%s450 + $0x1c] sm:$0xf]
        %s1766 = scalar_lea.vmem [#allocation5], 48
        %v1767 = vld [vmem:[%s1766] sm:$0xf]
        %v1776 = vunpack.c.l.b16 %v1758
        %v1777 = vunpack.c.l.b16 %v1759
        %v1778 = vunpack.c.l.b16 %v1760
        %v1779 = vunpack.c.l.b16 %v1761
        %v1780 = vunpack.c.l.b16 %v1762
        %v1781 = vunpack.c.l.b16 %v1763
        %v1782 = vunpack.c.l.b16 %v1764
        %v1783 = vunpack.c.l.b16 %v1765
        %v1784 = vpack.c.b16 %v1777, %v1776
        %v1785 = vpack.c.b16 %v1779, %v1778
        %v1786 = vpack.c.b16 %v1781, %v1780
        %v1787 = vpack.c.b16 %v1783, %v1782
        %v1789 = vsel %vm266, %v1784, 0
        %v1792 = vsel %vm266, %v1785, 0
        %v1795 = vsel %vm266, %v1786, 0
        %v1798 = vsel %vm266, %v1787, 0
        %v1801 = vsel %vm279, %v1767, 0
        %1803 = vmatprep.subr.bf16.mxu0 0
        %1804 = vmatpush1.bf16.msra.mxu0 %v1801
        %1805 = vmatprep.subr.bf16.mxu0 0
        %1806 = vmatpush1.bf16.msra.mxu0 0
        %1807 = vmatprep.subr.bf16.mxu0 0
        %1808 = vmatpush1.bf16.msra.mxu0 0
        %1809 = vmatprep.subr.bf16.mxu0 0
        %1810 = vmatpush1.bf16.msra.mxu0 0
        %1811 = vmatprep.subr.bf16.mxu0 0
        %1812 = vmatpush1.bf16.msra.mxu0 0
        %1813 = vmatprep.subr.bf16.mxu0 0
        %1814 = vmatpush1.bf16.msra.mxu0 0
        %1815 = vmatprep.subr.bf16.mxu0 0
        %1816 = vmatpush1.bf16.msra.mxu0 0
        %1817 = vmatprep.subr.bf16.mxu0 0
        %1818 = vmatpush1.bf16.msra.mxu0 0
        %1819 = vmatprep.subr.bf16.mxu0 0
        %1820 = vmatpush1.bf16.msra.mxu0 0
        %1821 = vmatprep.subr.bf16.mxu0 0
        %1822 = vmatpush1.bf16.msra.mxu0 0
        %1823 = vmatprep.subr.bf16.mxu0 0
        %1824 = vmatpush1.bf16.msra.mxu0 0
        %1825 = vmatprep.subr.bf16.mxu0 0
        %1826 = vmatpush1.bf16.msra.mxu0 0
        %1827 = vmatprep.subr.bf16.mxu0 0
        %1828 = vmatpush1.bf16.msra.mxu0 0
        %1829 = vmatprep.subr.bf16.mxu0 0
        %1830 = vmatpush1.bf16.msra.mxu0 0
        %1831 = vmatprep.subr.bf16.mxu0 0
        %1832 = vmatpush1.bf16.msra.mxu0 0
        %1833 = vmatprep.subr.bf16.mxu0 0
        %1834 = vmatpush1.bf16.msra.mxu0 0
        %1835 = vmatprep.mubr.bf16.mxu0 0
        %1836 = vmatmul.mubr.bf16.gmra.mrb[0].mxu0 %v1789
        %v1837 = vpop.f32.mrb[0].mxu0
        %v1838 = vadd.f32 0.0, %v1837
        %v1839 = vpop.f32.mrb[0].mxu0
        %v1840 = vpop.f32.mrb[0].mxu0
        %v1841 = vadd.f32 0.0, %v1840
        %v1842 = vpop.f32.mrb[0].mxu0
        %1843 = vmatprep.mubr.bf16.mxu0 0
        %1844 = vmatmul.mubr.bf16.gmra.mrb[0].mxu0 %v1792
        %v1845 = vpop.f32.mrb[0].mxu0
        %v1846 = vadd.f32 0.0, %v1845
        %v1847 = vpop.f32.mrb[0].mxu0
        %v1848 = vpop.f32.mrb[0].mxu0
        %v1849 = vadd.f32 0.0, %v1848
        %v1850 = vpop.f32.mrb[0].mxu0
        %1851 = vmatprep.mubr.bf16.mxu0 0
        %1852 = vmatmul.mubr.bf16.gmra.mrb[0].mxu0 %v1795
        %v1853 = vpop.f32.mrb[0].mxu0
        %v1854 = vadd.f32 0.0, %v1853
        %v1855 = vpop.f32.mrb[0].mxu0
        %v1856 = vpop.f32.mrb[0].mxu0
        %v1857 = vadd.f32 0.0, %v1856
        %v1858 = vpop.f32.mrb[0].mxu0
        %1859 = vmatprep.mubr.bf16.mxu0 0
        %1860 = vmatmul.mubr.bf16.gmra.mrb[0].mxu0 %v1798
        %v1861 = vpop.f32.mrb[0].mxu0
        %v1862 = vadd.f32 0.0, %v1861
        %v1863 = vpop.f32.mrb[0].mxu0
        %v1864 = vpop.f32.mrb[0].mxu0
        %v1865 = vadd.f32 0.0, %v1864
        %v1866 = vpop.f32.mrb[0].mxu0
        %1867 = vdwg.mxu0
        %v1868 = vadd.f32 %v1838, 0.0
        %v1869 = vadd.f32 %v1841, 0.0
        %v1870 = vadd.f32 %v1846, 0.0
        %v1871 = vadd.f32 %v1849, 0.0
        %v1872 = vadd.f32 %v1854, 0.0
        %v1873 = vadd.f32 %v1857, 0.0
        %v1874 = vadd.f32 %v1862, 0.0
        %v1875 = vadd.f32 %v1865, 0.0
        %s1876 = scalar_lea.vmem [#allocation5], 52
        %v1877 = vld [vmem:[%s1876] sm:$0xf]
        %v1879 = vsel %vm279, %v1877, 0
        %1881 = vmatprep.subr.bf16.mxu0 0
        %1882 = vmatpush1.bf16.msra.mxu0 %v1879
        %1883 = vmatprep.subr.bf16.mxu0 0
        %1884 = vmatpush1.bf16.msra.mxu0 0
        %1885 = vmatprep.subr.bf16.mxu0 0
        %1886 = vmatpush1.bf16.msra.mxu0 0
        %1887 = vmatprep.subr.bf16.mxu0 0
        %1888 = vmatpush1.bf16.msra.mxu0 0
        %1889 = vmatprep.subr.bf16.mxu0 0
        %1890 = vmatpush1.bf16.msra.mxu0 0
        %1891 = vmatprep.subr.bf16.mxu0 0
        %1892 = vmatpush1.bf16.msra.mxu0 0
        %1893 = vmatprep.subr.bf16.mxu0 0
        %1894 = vmatpush1.bf16.msra.mxu0 0
        %1895 = vmatprep.subr.bf16.mxu0 0
        %1896 = vmatpush1.bf16.msra.mxu0 0
        %1897 = vmatprep.subr.bf16.mxu0 0
        %1898 = vmatpush1.bf16.msra.mxu0 0
        %1899 = vmatprep.subr.bf16.mxu0 0
        %1900 = vmatpush1.bf16.msra.mxu0 0
        %1901 = vmatprep.subr.bf16.mxu0 0
        %1902 = vmatpush1.bf16.msra.mxu0 0
        %1903 = vmatprep.subr.bf16.mxu0 0
        %1904 = vmatpush1.bf16.msra.mxu0 0
        %1905 = vmatprep.subr.bf16.mxu0 0
        %1906 = vmatpush1.bf16.msra.mxu0 0
        %1907 = vmatprep.subr.bf16.mxu0 0
        %1908 = vmatpush1.bf16.msra.mxu0 0
        %1909 = vmatprep.subr.bf16.mxu0 0
        %1910 = vmatpush1.bf16.msra.mxu0 0
        %1911 = vmatprep.subr.bf16.mxu0 0
        %1912 = vmatpush1.bf16.msra.mxu0 0
        %1913 = vmatprep.mubr.bf16.mxu0 0
        %1914 = vmatmul.mubr.bf16.gmra.mrb[0].mxu0 %v1789
        %v1915 = vpop.f32.mrb[0].mxu0
        %v1916 = vadd.f32 0.0, %v1915
        %v1917 = vpop.f32.mrb[0].mxu0
        %v1918 = vpop.f32.mrb[0].mxu0
        %v1919 = vadd.f32 0.0, %v1918
        %v1920 = vpop.f32.mrb[0].mxu0
        %1921 = vmatprep.mubr.bf16.mxu0 0
        %1922 = vmatmul.mubr.bf16.gmra.mrb[0].mxu0 %v1792
        %v1923 = vpop.f32.mrb[0].mxu0
        %v1924 = vadd.f32 0.0, %v1923
        %v1925 = vpop.f32.mrb[0].mxu0
        %v1926 = vpop.f32.mrb[0].mxu0
        %v1927 = vadd.f32 0.0, %v1926
        %v1928 = vpop.f32.mrb[0].mxu0
        %1929 = vmatprep.mubr.bf16.mxu0 0
        %1930 = vmatmul.mubr.bf16.gmra.mrb[0].mxu0 %v1795
        %v1931 = vpop.f32.mrb[0].mxu0
        %v1932 = vadd.f32 0.0, %v1931
        %v1933 = vpop.f32.mrb[0].mxu0
        %v1934 = vpop.f32.mrb[0].mxu0
        %v1935 = vadd.f32 0.0, %v1934
        %v1936 = vpop.f32.mrb[0].mxu0
        %1937 = vmatprep.mubr.bf16.mxu0 0
        %1938 = vmatmul.mubr.bf16.gmra.mrb[0].mxu0 %v1798
        %v1939 = vpop.f32.mrb[0].mxu0
        %v1940 = vadd.f32 0.0, %v1939
        %v1941 = vpop.f32.mrb[0].mxu0
        %v1942 = vpop.f32.mrb[0].mxu0
        %v1943 = vadd.f32 0.0, %v1942
        %v1944 = vpop.f32.mrb[0].mxu0
        %1945 = vdwg.mxu0
        %v1954 = vrot.slane %v1916, 1
        %v1955 = vrot.slane %v1919, 1
        %v1956 = vsel %vm426, %v1954, %v1955
        %v1957 = vrot.slane %v1924, 1
        %v1958 = vrot.slane %v1927, 1
        %v1959 = vsel %vm426, %v1957, %v1958
        %v1960 = vrot.slane %v1932, 1
        %v1961 = vrot.slane %v1935, 1
        %v1962 = vsel %vm426, %v1960, %v1961
        %v1963 = vrot.slane %v1940, 1
        %v1964 = vrot.slane %v1943, 1
        %v1965 = vsel %vm426, %v1963, %v1964
        %v1974 = vadd.f32 %v1868, %v1956
        %v1975 = vadd.f32 %v1869, %v1955
        %v1976 = vadd.f32 %v1870, %v1959
        %v1977 = vadd.f32 %v1871, %v1958
        %v1978 = vadd.f32 %v1872, %v1962
        %v1979 = vadd.f32 %v1873, %v1961
        %v1980 = vadd.f32 %v1874, %v1965
        %v1981 = vadd.f32 %v1875, %v1964
        %v1982 = vld [vmem:[%s1508] sm:$0xf]
        %v1983 = vld [vmem:[%s1508 + $0x4] sm:$0xf]
        %v1984 = vld [vmem:[%s1508 + $0x8] sm:$0xf]
        %v1985 = vld [vmem:[%s1508 + $0xc] sm:$0xf]
        %v1986 = vld [vmem:[%s1508 + $0x10] sm:$0xf]
        %v1987 = vld [vmem:[%s1508 + $0x14] sm:$0xf]
        %v1988 = vld [vmem:[%s1508 + $0x18] sm:$0xf]
        %v1989 = vld [vmem:[%s1508 + $0x1c] sm:$0xf]
        %s1990 = scalar_lea.vmem [#allocation5], 56
        %v1991 = vld [vmem:[%s1990] sm:$0xf]
        %v2000 = vunpack.c.l.b16 %v1982
        %v2001 = vunpack.c.l.b16 %v1983
        %v2002 = vunpack.c.l.b16 %v1984
        %v2003 = vunpack.c.l.b16 %v1985
        %v2004 = vunpack.c.l.b16 %v1986
        %v2005 = vunpack.c.l.b16 %v1987
        %v2006 = vunpack.c.l.b16 %v1988
        %v2007 = vunpack.c.l.b16 %v1989
        %v2008 = vpack.c.b16 %v2001, %v2000
        %v2009 = vpack.c.b16 %v2003, %v2002
        %v2010 = vpack.c.b16 %v2005, %v2004
        %v2011 = vpack.c.b16 %v2007, %v2006
        %v2013 = vsel %vm266, %v2008, 0
        %v2016 = vsel %vm266, %v2009, 0
        %v2019 = vsel %vm266, %v2010, 0
        %v2022 = vsel %vm266, %v2011, 0
        %v2025 = vsel %vm279, %v1991, 0
        %2027 = vmatprep.subr.bf16.mxu0 0
        %2028 = vmatpush1.bf16.msra.mxu0 %v2025
        %2029 = vmatprep.subr.bf16.mxu0 0
        %2030 = vmatpush1.bf16.msra.mxu0 0
        %2031 = vmatprep.subr.bf16.mxu0 0
        %2032 = vmatpush1.bf16.msra.mxu0 0
        %2033 = vmatprep.subr.bf16.mxu0 0
        %2034 = vmatpush1.bf16.msra.mxu0 0
        %2035 = vmatprep.subr.bf16.mxu0 0
        %2036 = vmatpush1.bf16.msra.mxu0 0
        %2037 = vmatprep.subr.bf16.mxu0 0
        %2038 = vmatpush1.bf16.msra.mxu0 0
        %2039 = vmatprep.subr.bf16.mxu0 0
        %2040 = vmatpush1.bf16.msra.mxu0 0
        %2041 = vmatprep.subr.bf16.mxu0 0
        %2042 = vmatpush1.bf16.msra.mxu0 0
        %2043 = vmatprep.subr.bf16.mxu0 0
        %2044 = vmatpush1.bf16.msra.mxu0 0
        %2045 = vmatprep.subr.bf16.mxu0 0
        %2046 = vmatpush1.bf16.msra.mxu0 0
        %2047 = vmatprep.subr.bf16.mxu0 0
        %2048 = vmatpush1.bf16.msra.mxu0 0
        %2049 = vmatprep.subr.bf16.mxu0 0
        %2050 = vmatpush1.bf16.msra.mxu0 0
        %2051 = vmatprep.subr.bf16.mxu0 0
        %2052 = vmatpush1.bf16.msra.mxu0 0
        %2053 = vmatprep.subr.bf16.mxu0 0
        %2054 = vmatpush1.bf16.msra.mxu0 0
        %2055 = vmatprep.subr.bf16.mxu0 0
        %2056 = vmatpush1.bf16.msra.mxu0 0
        %2057 = vmatprep.subr.bf16.mxu0 0
        %2058 = vmatpush1.bf16.msra.mxu0 0
        %2059 = vmatprep.mubr.bf16.mxu0 0
        %2060 = vmatmul.mubr.bf16.gmra.mrb[0].mxu0 %v2013
        %v2061 = vpop.f32.mrb[0].mxu0
        %v2062 = vadd.f32 0.0, %v2061
        %v2063 = vpop.f32.mrb[0].mxu0
        %v2064 = vpop.f32.mrb[0].mxu0
        %v2065 = vadd.f32 0.0, %v2064
        %v2066 = vpop.f32.mrb[0].mxu0
        %2067 = vmatprep.mubr.bf16.mxu0 0
        %2068 = vmatmul.mubr.bf16.gmra.mrb[0].mxu0 %v2016
        %v2069 = vpop.f32.mrb[0].mxu0
        %v2070 = vadd.f32 0.0, %v2069
        %v2071 = vpop.f32.mrb[0].mxu0
        %v2072 = vpop.f32.mrb[0].mxu0
        %v2073 = vadd.f32 0.0, %v2072
        %v2074 = vpop.f32.mrb[0].mxu0
        %2075 = vmatprep.mubr.bf16.mxu0 0
        %2076 = vmatmul.mubr.bf16.gmra.mrb[0].mxu0 %v2019
        %v2077 = vpop.f32.mrb[0].mxu0
        %v2078 = vadd.f32 0.0, %v2077
        %v2079 = vpop.f32.mrb[0].mxu0
        %v2080 = vpop.f32.mrb[0].mxu0
        %v2081 = vadd.f32 0.0, %v2080
        %v2082 = vpop.f32.mrb[0].mxu0
        %2083 = vmatprep.mubr.bf16.mxu0 0
        %2084 = vmatmul.mubr.bf16.gmra.mrb[0].mxu0 %v2022
        %v2085 = vpop.f32.mrb[0].mxu0
        %v2086 = vadd.f32 0.0, %v2085
        %v2087 = vpop.f32.mrb[0].mxu0
        %v2088 = vpop.f32.mrb[0].mxu0
        %v2089 = vadd.f32 0.0, %v2088
        %v2090 = vpop.f32.mrb[0].mxu0
        %2091 = vdwg.mxu0
        %v2092 = vadd.f32 %v1974, %v2062
        %v2093 = vadd.f32 %v1975, %v2065
        %v2094 = vadd.f32 %v1976, %v2070
        %v2095 = vadd.f32 %v1977, %v2073
        %v2096 = vadd.f32 %v1978, %v2078
        %v2097 = vadd.f32 %v1979, %v2081
        %v2098 = vadd.f32 %v1980, %v2086
        %v2099 = vadd.f32 %v1981, %v2089
        %s2100 = scalar_lea.vmem [#allocation5], 60
        %v2101 = vld [vmem:[%s2100] sm:$0xf]
        %v2103 = vsel %vm279, %v2101, 0
        %2105 = vmatprep.subr.bf16.mxu0 0
        %2106 = vmatpush1.bf16.msra.mxu0 %v2103
        %2107 = vmatprep.subr.bf16.mxu0 0
        %2108 = vmatpush1.bf16.msra.mxu0 0
        %2109 = vmatprep.subr.bf16.mxu0 0
        %2110 = vmatpush1.bf16.msra.mxu0 0
        %2111 = vmatprep.subr.bf16.mxu0 0
        %2112 = vmatpush1.bf16.msra.mxu0 0
        %2113 = vmatprep.subr.bf16.mxu0 0
        %2114 = vmatpush1.bf16.msra.mxu0 0
        %2115 = vmatprep.subr.bf16.mxu0 0
        %2116 = vmatpush1.bf16.msra.mxu0 0
        %2117 = vmatprep.subr.bf16.mxu0 0
        %2118 = vmatpush1.bf16.msra.mxu0 0
        %2119 = vmatprep.subr.bf16.mxu0 0
        %2120 = vmatpush1.bf16.msra.mxu0 0
        %2121 = vmatprep.subr.bf16.mxu0 0
        %2122 = vmatpush1.bf16.msra.mxu0 0
        %2123 = vmatprep.subr.bf16.mxu0 0
        %2124 = vmatpush1.bf16.msra.mxu0 0
        %2125 = vmatprep.subr.bf16.mxu0 0
        %2126 = vmatpush1.bf16.msra.mxu0 0
        %2127 = vmatprep.subr.bf16.mxu0 0
        %2128 = vmatpush1.bf16.msra.mxu0 0
        %2129 = vmatprep.subr.bf16.mxu0 0
        %2130 = vmatpush1.bf16.msra.mxu0 0
        %2131 = vmatprep.subr.bf16.mxu0 0
        %2132 = vmatpush1.bf16.msra.mxu0 0
        %2133 = vmatprep.subr.bf16.mxu0 0
        %2134 = vmatpush1.bf16.msra.mxu0 0
        %2135 = vmatprep.subr.bf16.mxu0 0
        %2136 = vmatpush1.bf16.msra.mxu0 0
        %2137 = vmatprep.mubr.bf16.mxu0 0
        %2138 = vmatmul.mubr.bf16.gmra.mrb[0].mxu0 %v2013
        %v2139 = vpop.f32.mrb[0].mxu0
        %v2140 = vadd.f32 0.0, %v2139
        %v2141 = vpop.f32.mrb[0].mxu0
        %v2142 = vpop.f32.mrb[0].mxu0
        %v2143 = vadd.f32 0.0, %v2142
        %v2144 = vpop.f32.mrb[0].mxu0
        %2145 = vmatprep.mubr.bf16.mxu0 0
        %2146 = vmatmul.mubr.bf16.gmra.mrb[0].mxu0 %v2016
        %v2147 = vpop.f32.mrb[0].mxu0
        %v2148 = vadd.f32 0.0, %v2147
        %v2149 = vpop.f32.mrb[0].mxu0
        %v2150 = vpop.f32.mrb[0].mxu0
        %v2151 = vadd.f32 0.0, %v2150
        %v2152 = vpop.f32.mrb[0].mxu0
        %2153 = vmatprep.mubr.bf16.mxu0 0
        %2154 = vmatmul.mubr.bf16.gmra.mrb[0].mxu0 %v2019
        %v2155 = vpop.f32.mrb[0].mxu0
        %v2156 = vadd.f32 0.0, %v2155
        %v2157 = vpop.f32.mrb[0].mxu0
        %v2158 = vpop.f32.mrb[0].mxu0
        %v2159 = vadd.f32 0.0, %v2158
        %v2160 = vpop.f32.mrb[0].mxu0
        %2161 = vmatprep.mubr.bf16.mxu0 0
        %2162 = vmatmul.mubr.bf16.gmra.mrb[0].mxu0 %v2022
        %v2163 = vpop.f32.mrb[0].mxu0
        %v2164 = vadd.f32 0.0, %v2163
        %v2165 = vpop.f32.mrb[0].mxu0
        %v2166 = vpop.f32.mrb[0].mxu0
        %v2167 = vadd.f32 0.0, %v2166
        %v2168 = vpop.f32.mrb[0].mxu0
        %2169 = vdwg.mxu0
        %v2178 = vrot.slane %v2140, 1
        %v2179 = vrot.slane %v2143, 1
        %v2180 = vsel %vm426, %v2178, %v2179
        %v2181 = vrot.slane %v2148, 1
        %v2182 = vrot.slane %v2151, 1
        %v2183 = vsel %vm426, %v2181, %v2182
        %v2184 = vrot.slane %v2156, 1
        %v2185 = vrot.slane %v2159, 1
        %v2186 = vsel %vm426, %v2184, %v2185
        %v2187 = vrot.slane %v2164, 1
        %v2188 = vrot.slane %v2167, 1
        %v2189 = vsel %vm426, %v2187, %v2188
        %v2198 = vadd.f32 %v2092, %v2180
        %v2199 = vadd.f32 %v2093, %v2179
        %v2200 = vadd.f32 %v2094, %v2183
        %v2201 = vadd.f32 %v2095, %v2182
        %v2202 = vadd.f32 %v2096, %v2186
        %v2203 = vadd.f32 %v2097, %v2185
        %v2204 = vadd.f32 %v2098, %v2189
        %v2205 = vadd.f32 %v2099, %v2188
        %v2206 = vpack.c.bf16 %v2199, %v2198
        %v2207 = vpack.c.bf16 %v2201, %v2200
        %v2208 = vpack.c.bf16 %v2203, %v2202
        %v2209 = vpack.c.bf16 %v2205, %v2204
        %v2214 = vunpack.c.l.b16 %v2206
        %v2215 = vunpack.c.h.b16 %v2206
        %v2216 = vunpack.c.l.b16 %v2207
        %v2217 = vunpack.c.h.b16 %v2207
        %v2218 = vunpack.c.l.b16 %v2208
        %v2219 = vunpack.c.h.b16 %v2208
        %v2220 = vunpack.c.l.b16 %v2209
        %v2221 = vunpack.c.h.b16 %v2209
        %v2222 = vpack.c.b16 %v2214, %v2214
        %v2223 = vpack.c.b16 %v2215, %v2215
        %v2224 = vpack.c.b16 %v2216, %v2216
        %v2225 = vpack.c.b16 %v2217, %v2217
        %v2226 = vpack.c.b16 %v2218, %v2218
        %v2227 = vpack.c.b16 %v2219, %v2219
        %v2228 = vpack.c.b16 %v2220, %v2220
        %v2229 = vpack.c.b16 %v2221, %v2221
        %v2231 = vshrl.u32 %v2222, 16
        %v2233 = vrot.slane %v2231, 4
        %v2234 = vshll.u32 %v2222, 16
        %v2236 = vrot.slane %v2234, 5
        %v2237 = vor.u32 %v2233, %v2236
        %v2238 = vrot.slane %v2237, 4
        %v2240 = vshll.u32 %v2223, 16
        %v2242 = vrot.slane %v2240, 5
        %v2243 = vsel %vm1175, %v2238, %v2242
        %v2245 = vshrl.u32 %v2224, 16
        %v2247 = vrot.slane %v2245, 4
        %v2248 = vshll.u32 %v2224, 16
        %v2250 = vrot.slane %v2248, 5
        %v2251 = vor.u32 %v2247, %v2250
        %v2252 = vrot.slane %v2251, 4
        %v2254 = vshll.u32 %v2225, 16
        %v2256 = vrot.slane %v2254, 5
        %v2257 = vsel %vm1175, %v2252, %v2256
        %v2259 = vshrl.u32 %v2226, 16
        %v2261 = vrot.slane %v2259, 4
        %v2262 = vshll.u32 %v2226, 16
        %v2264 = vrot.slane %v2262, 5
        %v2265 = vor.u32 %v2261, %v2264
        %v2266 = vrot.slane %v2265, 4
        %v2268 = vshll.u32 %v2227, 16
        %v2270 = vrot.slane %v2268, 5
        %v2271 = vsel %vm1175, %v2266, %v2270
        %v2273 = vshrl.u32 %v2228, 16
        %v2275 = vrot.slane %v2273, 4
        %v2276 = vshll.u32 %v2228, 16
        %v2278 = vrot.slane %v2276, 5
        %v2279 = vor.u32 %v2275, %v2278
        %v2280 = vrot.slane %v2279, 4
        %v2282 = vshll.u32 %v2229, 16
        %v2284 = vrot.slane %v2282, 5
        %v2285 = vsel %vm1175, %v2280, %v2284
        %s2290 = scalar_lea.vmem %s223, 48 [#allocation7]
        %2291 = vst.msk [vmem:[%s2290] sm:$0xf] %vm663, %v2243
        %2292 = vst.msk [vmem:[%s2290 + $0x4] sm:$0xf] %vm663, %v2257
        %2293 = vst.msk [vmem:[%s2290 + $0x8] sm:$0xf] %vm663, %v2271
        %2294 = vst.msk [vmem:[%s2290 + $0xc] sm:$0xf] %vm663, %v2285
        %v2303 = vrot.slane %v2198, 1
        %v2304 = vrot.slane %v2199, 1
        %v2305 = vsel %vm426, %v2303, %v2304
        %v2306 = vrot.slane %v2200, 1
        %v2307 = vrot.slane %v2201, 1
        %v2308 = vsel %vm426, %v2306, %v2307
        %v2309 = vrot.slane %v2202, 1
        %v2310 = vrot.slane %v2203, 1
        %v2311 = vsel %vm426, %v2309, %v2310
        %v2312 = vrot.slane %v2204, 1
        %v2313 = vrot.slane %v2205, 1
        %v2314 = vsel %vm426, %v2312, %v2313
        %v2319 = vsel %vm668, %v2305, 0.0
        %v2320 = vsel %vm668, %v2308, 0.0
        %v2321 = vadd.f32 %v2319, %v2320
        %v2322 = vsel %vm668, %v2311, 0.0
        %v2323 = vadd.f32 %v2321, %v2322
        %v2324 = vsel %vm668, %v2314, 0.0
        %v2325 = vadd.f32 %v2323, %v2324
        %v2326 = vrot.slane %v2325, 4
        %v2327 = vadd.f32 %v2325, %v2326
        %v2328 = vrot.slane %v2327, 2
        %v2329 = vadd.f32 %v2327, %v2328
        %v2330 = vrot.slane %v2329, 1
        %v2331 = vadd.f32 %v2329, %v2330
        %v2332 = vadd.f32 %v1739, %v2331
        %v2333 = vmul.f32 %v2305, %v2305
        %v2334 = vmul.f32 %v2308, %v2308
        %v2335 = vmul.f32 %v2311, %v2311
        %v2336 = vmul.f32 %v2314, %v2314
        %v2337 = vsel %vm668, %v2333, 0.0
        %v2338 = vsel %vm668, %v2334, 0.0
        %v2339 = vadd.f32 %v2337, %v2338
        %v2340 = vsel %vm668, %v2335, 0.0
        %v2341 = vadd.f32 %v2339, %v2340
        %v2342 = vsel %vm668, %v2336, 0.0
        %v2343 = vadd.f32 %v2341, %v2342
        %v2344 = vrot.slane %v2343, 4
        %v2345 = vadd.f32 %v2343, %v2344
        %v2346 = vrot.slane %v2345, 2
        %v2347 = vadd.f32 %v2345, %v2346
        %v2348 = vrot.slane %v2347, 1
        %v2349 = vadd.f32 %v2347, %v2348
        %v2350 = vadd.f32 %v1757, %v2349
        %vm2351 = vcmask 1040384
        %v2352 = vsel %vm2351, %v2332, %v2350
        %vm2353 = vcmask 25600
        %2354 = vst.msk [vmem:[%s230] sm:$0x3] %vm2353, %v2352
        %s2355 = sand.u32 %s94, 1
        %s2356 = scalar_lea.sflag [#allocation4], %s2355
        %s2357 = sand.u32 %s94, 1
        %s2358 = smul.addr %s2357, 64
        %s2359 = scalar_lea.vmem [#allocation7], %s2358
        %s2360 = sand.u32 %s122, 1
        %s2361 = scalar_lea.sflag [#allocation9], %s2360
        %s2362 = sand.u32 %s122, 1
        %s2363 = smul.addr %s2362, 2
        %s2364 = scalar_lea.vmem [#allocation8], %s2363
        // Predicated region
        $region37: #{tpu_custom_call.1} parent=27 // pred_check
          %p2365 = pneg %p104
        $region38: #{tpu_custom_call.1} parent=27 // pred_check_branch
          %2367 = sbr.rel (%p2365) target = $region40
        $region39: #{tpu_custom_call.1} parent=27 // pred_region
          #allocation11 [shape = 'u32[6]{0}', space=smem, size = 0x18, scoped, tag = 'DMA stride descriptor']
          %s2368 = smul.u32 4, %s30
          %s2370 = ssub.s32 1024, 1024
          %2371 = vsyncadd %s2356, %s2370
          %s2372 = smul.addr %s29, 32
          %s2373 = sadd.s32 %s2368, %s2372
          %s2374 = smul.addr %s2373, 64
          %s2375 = scalar_lea.hbm %s2, %s2374
          %s2377 = sshll.u32 1, 14
          %s2378 = sxor.u32 4294967295, %s2377
          %s2381 = sshll.u32 7, 18
          %s2382 = sxor.u32 4294967295, %s2381
          %s2383 = sand.u32 0, %s2382
          %s2385 = sor.u32 %s2383, 0
          %s2387 = sshll.u32 3, 24
          %s2388 = sxor.u32 4294967295, %s2387
          %s2389 = sand.u32 %s2385, %s2388
          %s2391 = sor.u32 %s2389, 0
          %s2392 = sshll.u32 %s2359, 4
          %s2393 = int_to_ptr.vmem [resolvable:$true] %s2392
          %2399 = sst [smem:[#allocation11]] 256
          %s2400 = scalar_lea.smem [#allocation11], 1
          %2401 = sst [smem:[%s2400]] 512
          %s2402 = scalar_lea.smem [#allocation11], 2
          %2403 = sst [smem:[%s2402]] 4
          %s2404 = scalar_lea.smem [#allocation11], 3
          %2405 = sst [smem:[%s2404]] 64
          %s2406 = scalar_lea.smem [#allocation11], 4
          %2407 = sst [smem:[%s2406]] 64
          %s2408 = scalar_lea.smem [#allocation11], 5
          %2409 = sst [smem:[%s2408]] 4
          %2411 = dma.general %s2393, 1024, %s2375, %s2356, [#allocation10], [#allocation11], %s2391, 0
        $region40: #{tpu_custom_call.1} parent=27 // pred_fallthru
          _
        // Predicated region
        $region41: #{tpu_custom_call.1} parent=27 // pred_check
          %p2412 = pneg %p132
        $region42: #{tpu_custom_call.1} parent=27 // pred_check_branch
          %2414 = sbr.rel (%p2412) target = $region44
        $region43: #{tpu_custom_call.1} parent=27 // pred_region
          %s2416 = ssub.s32 32, 32
          %2417 = vsyncadd %s2361, %s2416
          %s2418 = smul.addr %s29, 2
          %s2419 = sadd.s32 %s30, %s2418
          %s2420 = smul.addr %s2419, 32
          %s2421 = scalar_lea.hbm %s3, %s2420
          %s2423 = sshll.u32 %s2364, 4
          %s2424 = int_to_ptr.vmem [resolvable:$true] %s2423
          %2426 = dma.vmem_to_hbm [thread:$0]  %s2424, 32, %s2421, %s2361
        $region44: #{tpu_custom_call.1} parent=27 // pred_fallthru
          _
      $region28: #{tpu_custom_call.1} parent=5 // pred_fallthru
        _
      %p2427 = scmp.le.s32.totalorder 2, %s20
      // Predicated region
      $region45: #{tpu_custom_call.1} parent=5 // pred_check
        %p2428 = pneg %p2427
      $region46: #{tpu_custom_call.1} parent=5 // pred_check_branch
        %2430 = sbr.rel (%p2428) target = $region48
      $region47: #{tpu_custom_call.1} parent=5 // pred_region
        %s2431 = ssub.s32 %s20, 2
        // Predicated region
        $region49: #{tpu_custom_call.1} parent=47 // pred_check
          %p2432 = pneg %p110
        $region50: #{tpu_custom_call.1} parent=47 // pred_check_branch
          %2434 = sbr.rel (%p2432) target = $region52
        $region51: #{tpu_custom_call.1} parent=47 // pred_region
          %s2435 = sand.u32 %s95, 1
          %s2436 = scalar_lea.sflag [#allocation4], %s2435
          %s2437 = sand.u32 %s95, 1
          %s2438 = smul.addr %s2437, 64
          %s2439 = scalar_lea.vmem [#allocation7], %s2438
          %2440 = dma.done %s2436, 1024
        $region52: #{tpu_custom_call.1} parent=47 // pred_fallthru
          _
        // Predicated region
        $region53: #{tpu_custom_call.1} parent=47 // pred_check
          %p2441 = pneg %p138
        $region54: #{tpu_custom_call.1} parent=47 // pred_check_branch
          %2443 = sbr.rel (%p2441) target = $region56
        $region55: #{tpu_custom_call.1} parent=47 // pred_region
          %s2444 = sand.u32 %s123, 1
          %s2445 = scalar_lea.sflag [#allocation9], %s2444
          %s2446 = sand.u32 %s123, 1
          %s2447 = smul.addr %s2446, 2
          %s2448 = scalar_lea.vmem [#allocation8], %s2447
          %2449 = dma.done %s2445, 32
        $region56: #{tpu_custom_call.1} parent=47 // pred_fallthru
          _
      $region48: #{tpu_custom_call.1} parent=5 // pred_fallthru
        _
    $region6: #{tpu_custom_call.1} parent=1 // loop_footer
      %s24 = sadd.s32 1, %s20
    $region7: #{tpu_custom_call.1} parent=1 // loop_footer_branch
      %19 = sbr.rel target = $region3
    $region8: #{tpu_custom_call.1} parent=1 // loop_exit
      _
    %2450 = vsyncpa [#allocation3], 1
    %s2451 = scalar_lea.sflag [#allocation3], 1
    %2452 = vsyncpa %s2451, 1
    %2453 = vsyncpa [#allocation6], 1
    %2454 = vsyncpa [#allocation4], 1
    %s2455 = scalar_lea.sflag [#allocation4], 1
    %2456 = vsyncpa %s2455, 1
    %2457 = vsyncpa [#allocation9], 1
    %s2458 = scalar_lea.sflag [#allocation9], 1
    %2459 = vsyncpa %s2458, 1

</llo_original>
